<compile_context>
chip_gen: v6e
topology: v6e:2x2x1
jax: 0.10.0
libtpu: 0.0.40
codegen_flags: <defaults>
</compile_context>

<pallas_src>
import math

import jax
import jax.numpy as jnp
from jax import lax
from jax.experimental import pallas as pl
from jax.experimental.pallas import tpu as pltpu

LOG_2PI = math.log(2.0 * math.pi)
KSIZE = 5      # value_embed depthwise kernel size
PAD = 2        # padding=2


def _dis_layer_kernel(x_ref, w1_ref, b1_ref, w2_ref, b2_ref, mask_ref, pdf_ref,
                      out_ref, shift_ref, mid_ref):
    """Single grid step; channel/batch-banded lane layout.

    x_ref    : (W+4, L)     VMEM  zero-padded banded input, L = B*C*BAND lanes
    w1_ref   : (25, L)      VMEM  conv #1 tap weights (per-channel, band-replicated)
    b1_ref   : (1, L)       VMEM  conv #1 bias (band-replicated)
    w2_ref   : (25, L)      VMEM  conv #2 tap weights
    b2_ref   : (1, L)       VMEM  conv #2 bias
    mask_ref : (1, L)       VMEM  1.0 on interior lanes of each band, else 0.0
    pdf_ref  : (W, L)       VMEM  mean_k pdf, banded (0 outside band interiors)
    out_ref  : (W, L)       VMEM  banded output x + v*pdf  (lane-dense store)
    shift_ref: (5*(W+4), L) VMEM  scratch: 5 dx-lane-shifted copies of the
                                  current conv input, stacked along sublanes
    mid_ref  : (W+4, L)     VMEM  scratch: zero-halo padded relu(conv1) slab
    """
    Wp, L = x_ref.shape
    W = Wp - 2 * PAD

    def fill_shifts(src_ref):
        # shift block dx, element [r, l] == src[r, l + dx - PAD]  (zero beyond edges).
        # Built with explicit slice copies (no roll): edges are written with zeros
        # so no stale scratch can leak through the halo mask.
        for dx in range(KSIZE):
            m = dx - PAD
            row0 = dx * Wp
            if m == 0:
                shift_ref[pl.ds(row0, Wp), :] = src_ref[...]
            elif m > 0:
                shift_ref[pl.ds(row0, Wp), pl.ds(0, L - m)] = src_ref[:, pl.ds(m, L - m)]
                shift_ref[pl.ds(row0, Wp), pl.ds(L - m, m)] = jnp.zeros((Wp, m), jnp.float32)
            else:
                shift_ref[pl.ds(row0, Wp), pl.ds(-m, L + m)] = src_ref[:, pl.ds(0, L + m)]
                shift_ref[pl.ds(row0, Wp), pl.ds(0, -m)] = jnp.zeros((Wp, -m), jnp.float32)

    def dwconv(w_ref):
        # 5x5 depthwise conv over all bands at once: dx shifts come from
        # shift_ref (built once per conv); dy shifts are free sublane-offset
        # VMEM reads.  Per-band halos keep <=2-lane shifts from crossing bands.
        acc = jnp.zeros((W, L), jnp.float32)
        for dy in range(KSIZE):
            for dx in range(KSIZE):
                tap = dy * KSIZE + dx
                win = shift_ref[pl.ds(dx * Wp + dy, W), :]         # (W, L)
                acc = acc + win * w_ref[pl.ds(tap, 1), :]          # (1, L) bcast
        return acc

    # ---- conv1 + ReLU, re-padded (zero halo) into mid_ref ----
    fill_shifts(x_ref)
    mid = jnp.maximum(dwconv(w1_ref) + b1_ref[...], 0.0) * mask_ref[...]
    halo = jnp.zeros((PAD, L), jnp.float32)
    mid_ref[pl.ds(0, PAD), :] = halo
    mid_ref[pl.ds(W + PAD, PAD), :] = halo
    mid_ref[pl.ds(PAD, W), :] = mid

    # ---- conv2; out = x + v * mean_k pdf  (single dense store) ----
    fill_shifts(mid_ref)
    v = dwconv(w2_ref) + b2_ref[...]
    out_ref[...] = x_ref[pl.ds(PAD, W), :] + v * pdf_ref[...]


@jax.jit
def dis_layer_forward(x_nchw, w1, b1, w2, b2, loc, scal, pos_scal):
    """NCHW in -> NCHW out. pdf and all banding layout hoisted to the wrapper."""
    B, C, W, H = x_nchw.shape
    x = x_nchw.astype(jnp.float32)
    KK = KSIZE * KSIZE

    # Per-(b, c) lane band: [PAD halo | H interior | PAD halo | pad-to-32].
    # With B*C = 8 this makes the slab exactly 256 lanes -> dense vreg columns.
    BAND = ((H + 2 * PAD + 31) // 32) * 32
    L = B * C * BAND
    Wp = W + 2 * PAD

    # ---- Gaussian-mixture pdf: depends only on (W, H, loc, scal, pos_scal) ----
    ps = pos_scal.reshape(()).astype(jnp.float32)
    iw = jnp.arange(W, dtype=jnp.float32) * ps                    # (W,)
    jh = jnp.arange(H, dtype=jnp.float32) * ps                    # (H,)
    z0 = (iw[:, None] - loc[None, :, 0]) / scal[None, :, 0]       # (W, K)
    z1 = (jh[:, None] - loc[None, :, 1]) / scal[None, :, 1]       # (H, K)
    lognorm = -jnp.sum(jnp.log(scal), axis=-1) - LOG_2PI          # (K,)
    logp = (-0.5 * (z0[:, None, :] ** 2 + z1[None, :, :] ** 2)
            + lognorm[None, None, :])                             # (W, H, K)
    pdf_mean = jnp.mean(jnp.exp(logp), axis=-1)                   # (W, H)

    # ---- banded layouts (pure layout plumbing on a few KiB) ----
    x_slab = jnp.pad(x, ((0, 0), (0, 0), (PAD, PAD), (PAD, BAND - H - PAD)))
    x_slab = jnp.transpose(x_slab, (2, 0, 1, 3)).reshape(Wp, L)   # (W+4, L)

    def band_weights(w):
        tap = jnp.transpose(w.reshape(C, KK).astype(jnp.float32), (1, 0))   # (25, C)
        return jnp.broadcast_to(tap[:, None, :, None], (KK, B, C, BAND)).reshape(KK, L)

    def band_bias(b):
        return jnp.broadcast_to(b.astype(jnp.float32)[None, None, :, None],
                                (1, B, C, BAND)).reshape(1, L)

    w1_band, w2_band = band_weights(w1), band_weights(w2)
    b1_band, b2_band = band_bias(b1), band_bias(b2)

    lane = jnp.arange(BAND)
    interior = ((lane >= PAD) & (lane < PAD + H)).astype(jnp.float32)       # (BAND,)
    mask_band = jnp.tile(interior, B * C).reshape(1, L)

    pdf_pad = jnp.pad(pdf_mean, ((0, 0), (PAD, BAND - H - PAD)))            # (W, BAND)
    pdf_band = jnp.broadcast_to(pdf_pad[:, None, :], (W, B * C, BAND)).reshape(W, L)

    out_banded = pl.pallas_call(
        _dis_layer_kernel,
        out_shape=jax.ShapeDtypeStruct((W, L), jnp.float32),
        grid_spec=pltpu.PrefetchScalarGridSpec(
            num_scalar_prefetch=0,
            grid=(1,),
            in_specs=[
                pl.BlockSpec((Wp, L), lambda i: (0, 0)),     # x slab
                pl.BlockSpec((KK, L), lambda i: (0, 0)),     # w1 taps
                pl.BlockSpec((1, L), lambda i: (0, 0)),      # b1
                pl.BlockSpec((KK, L), lambda i: (0, 0)),     # w2 taps
                pl.BlockSpec((1, L), lambda i: (0, 0)),      # b2
                pl.BlockSpec((1, L), lambda i: (0, 0)),      # interior mask
                pl.BlockSpec((W, L), lambda i: (0, 0)),      # pdf (banded)
            ],
            out_specs=pl.BlockSpec((W, L), lambda i: (0, 0)),
            scratch_shapes=[
                pltpu.VMEM((KSIZE * Wp, L), jnp.float32),    # 5 dx-shifted slabs
                pltpu.VMEM((Wp, L), jnp.float32),            # padded mid slab
            ],
        ),
        compiler_params=pltpu.CompilerParams(
            dimension_semantics=("arbitrary",)),
    )(x_slab, w1_band, b1_band, w2_band, b2_band, mask_band, pdf_band)

    out = out_banded.reshape(W, B, C, BAND)[:, :, :, PAD:PAD + H]           # (W,B,C,H)
    return jnp.transpose(out, (1, 2, 0, 3))                                 # (B,C,W,H)


def _reference(x, w1, b1, w2, b2, loc, scal, pos_scal):
    """Pure-JAX reference (independent conv path: lax.conv_general_dilated)."""
    B, C, W, H = x.shape

    def dwconv(inp, wt, bias):
        out = lax.conv_general_dilated(
            inp, wt, window_strides=(1, 1), padding=((PAD, PAD), (PAD, PAD)),
            feature_group_count=C,
            dimension_numbers=("NCHW", "OIHW", "NCHW"))
        return out + bias.reshape(1, C, 1, 1)

    v = dwconv(jax.nn.relu(dwconv(x, w1, b1)), w2, b2)

    ii, jj = jnp.meshgrid(jnp.arange(W, dtype=jnp.float32),
                          jnp.arange(H, dtype=jnp.float32), indexing="ij")
    pts = jnp.stack([ii, jj], axis=-1) * pos_scal[0]                   # (W,H,2)
    z = (pts[:, :, None, :] - loc[None, None]) / scal[None, None]
    logp = (-0.5 * jnp.sum(z * z, -1)
            - jnp.sum(jnp.log(scal), -1)[None, None] - LOG_2PI)        # (W,H,K)
    pdf_mean = jnp.mean(jnp.exp(logp), axis=-1)                        # (W,H)
    return x + v * pdf_mean[None, None]


if __name__ == "__main__":
    key = jax.random.PRNGKey(0)
    B, C, W, H = 2, 4, 16, 16           # batch=2, channel=4, spatial=16
    K = 8                               # local_num

    ks = jax.random.split(key, 8)
    x = jax.random.normal(ks[0], (B, C, W, H), jnp.float32)
    # value_embed: two depthwise Conv2d(channel, channel, k=5, groups=channel)
    w1 = jax.random.normal(ks[1], (C, 1, KSIZE, KSIZE), jnp.float32) * 0.1
    b1 = jax.random.normal(ks[2], (C,), jnp.float32) * 0.1
    w2 = jax.random.normal(ks[3], (C, 1, KSIZE, KSIZE), jnp.float32) * 0.1
    b2 = jax.random.normal(ks[4], (C,), jnp.float32) * 0.1
    # normal_loc / normal_scal ~ torch.rand(local_num, 2)  (positive diag scales)
    loc = jax.random.uniform(ks[5], (K, 2), jnp.float32)
    scal = jax.random.uniform(ks[6], (K, 2), jnp.float32, minval=0.1, maxval=1.0)
    pos_scal = jnp.ones((1,), jnp.float32)   # position_scal = ones(1)

    out = dis_layer_forward(x, w1, b1, w2, b2, loc, scal, pos_scal)
    out = jax.block_until_ready(out)

    ref = _reference(x, w1, b1, w2, b2, loc, scal, pos_scal)
    err = float(jnp.max(jnp.abs(out - ref)))
    if not (err < 1e-4):
        raise AssertionError(f"mismatch vs reference: max abs err = {err}")

    print("KERNEL_OK")
</pallas_src>

<mosaic_0001>
module attributes {stable_mosaic.version = 11 : i64} {
  func.func @_dis_layer_kernel(%arg0: i32, %arg1: memref<20x256xf32, #tpu.memory_space<vmem>>, %arg2: memref<25x256xf32, #tpu.memory_space<vmem>>, %arg3: memref<1x256xf32, #tpu.memory_space<vmem>>, %arg4: memref<25x256xf32, #tpu.memory_space<vmem>>, %arg5: memref<1x256xf32, #tpu.memory_space<vmem>>, %arg6: memref<1x256xf32, #tpu.memory_space<vmem>>, %arg7: memref<16x256xf32, #tpu.memory_space<vmem>>, %arg8: memref<16x256xf32, #tpu.memory_space<vmem>>, %arg9: memref<100x256xf32, #tpu.memory_space<vmem>>, %arg10: memref<20x256xf32, #tpu.memory_space<vmem>>) attributes {dimension_semantics = [#tpu.dimension_semantics<arbitrary>], iteration_bounds = array<i64: 1>, scalar_prefetch = 0 : i64, scratch_operands = 2 : i64, tpu.core_type = #tpu.core_type<tc>, window_params = [{pipeline_mode = #tpu.pipeline_mode<synchronous>, transform_indices = @transform_0, window_bounds = array<i64: 20, 256>}, {pipeline_mode = #tpu.pipeline_mode<synchronous>, transform_indices = @transform_1, window_bounds = array<i64: 25, 256>}, {pipeline_mode = #tpu.pipeline_mode<synchronous>, transform_indices = @transform_2, window_bounds = array<i64: 1, 256>}, {pipeline_mode = #tpu.pipeline_mode<synchronous>, transform_indices = @transform_3, window_bounds = array<i64: 25, 256>}, {pipeline_mode = #tpu.pipeline_mode<synchronous>, transform_indices = @transform_4, window_bounds = array<i64: 1, 256>}, {pipeline_mode = #tpu.pipeline_mode<synchronous>, transform_indices = @transform_5, window_bounds = array<i64: 1, 256>}, {pipeline_mode = #tpu.pipeline_mode<synchronous>, transform_indices = @transform_6, window_bounds = array<i64: 16, 256>}, {pipeline_mode = #tpu.pipeline_mode<synchronous>, transform_indices = @transform_7, window_bounds = array<i64: 16, 256>}]} {
    %c0 = arith.constant 0 : index
    %c0_0 = arith.constant 0 : index
    %0 = vector.load %arg1[%c0, %c0_0] : memref<20x256xf32, #tpu.memory_space<vmem>>, vector<20x254xf32>
    %c0_1 = arith.constant 0 : index
    %c2 = arith.constant 2 : index
    %1 = vector.load %arg9[%c0_1, %c2] : memref<100x256xf32, #tpu.memory_space<vmem>>, vector<20x254xf32>
    tpu.vector_store %arg9[%c0_1, %c2], %0 {strides = array<i32>} : memref<100x256xf32, #tpu.memory_space<vmem>>, vector<20x254xf32>,
    %cst = arith.constant 0.000000e+00 : f32
    %2 = vector.broadcast %cst : f32 to vector<20x2xf32>
    %c0_2 = arith.constant 0 : index
    %c0_3 = arith.constant 0 : index
    %3 = vector.load %arg9[%c0_2, %c0_3] : memref<100x256xf32, #tpu.memory_space<vmem>>, vector<20x2xf32>
    tpu.vector_store %arg9[%c0_2, %c0_3], %2 {strides = array<i32>} : memref<100x256xf32, #tpu.memory_space<vmem>>, vector<20x2xf32>,
    %c0_4 = arith.constant 0 : index
    %c0_5 = arith.constant 0 : index
    %4 = vector.load %arg1[%c0_4, %c0_5] : memref<20x256xf32, #tpu.memory_space<vmem>>, vector<20x255xf32>
    %c20 = arith.constant 20 : index
    %c1 = arith.constant 1 : index
    %5 = vector.load %arg9[%c20, %c1] : memref<100x256xf32, #tpu.memory_space<vmem>>, vector<20x255xf32>
    tpu.vector_store %arg9[%c20, %c1], %4 {strides = array<i32>} : memref<100x256xf32, #tpu.memory_space<vmem>>, vector<20x255xf32>,
    %cst_6 = arith.constant 0.000000e+00 : f32
    %6 = vector.broadcast %cst_6 : f32 to vector<20x1xf32>
    %c20_7 = arith.constant 20 : index
    %c0_8 = arith.constant 0 : index
    %7 = vector.load %arg9[%c20_7, %c0_8] : memref<100x256xf32, #tpu.memory_space<vmem>>, vector<20x1xf32>
    tpu.vector_store %arg9[%c20_7, %c0_8], %6 {strides = array<i32>} : memref<100x256xf32, #tpu.memory_space<vmem>>, vector<20x1xf32>,
    %c0_9 = arith.constant 0 : index
    %c0_10 = arith.constant 0 : index
    %8 = vector.load %arg1[%c0_9, %c0_10] : memref<20x256xf32, #tpu.memory_space<vmem>>, vector<20x256xf32>
    %c40 = arith.constant 40 : index
    %c0_11 = arith.constant 0 : index
    %9 = vector.load %arg9[%c40, %c0_11] : memref<100x256xf32, #tpu.memory_space<vmem>>, vector<20x256xf32>
    tpu.vector_store %arg9[%c40, %c0_11], %8 {strides = array<i32>} : memref<100x256xf32, #tpu.memory_space<vmem>>, vector<20x256xf32>,
    %c0_12 = arith.constant 0 : index
    %c1_13 = arith.constant 1 : index
    %10 = vector.load %arg1[%c0_12, %c1_13] : memref<20x256xf32, #tpu.memory_space<vmem>>, vector<20x255xf32>
    %c60 = arith.constant 60 : index
    %c0_14 = arith.constant 0 : index
    %11 = vector.load %arg9[%c60, %c0_14] : memref<100x256xf32, #tpu.memory_space<vmem>>, vector<20x255xf32>
    tpu.vector_store %arg9[%c60, %c0_14], %10 {strides = array<i32>} : memref<100x256xf32, #tpu.memory_space<vmem>>, vector<20x255xf32>,
    %cst_15 = arith.constant 0.000000e+00 : f32
    %12 = vector.broadcast %cst_15 : f32 to vector<20x1xf32>
    %c60_16 = arith.constant 60 : index
    %c255 = arith.constant 255 : index
    %13 = vector.load %arg9[%c60_16, %c255] : memref<100x256xf32, #tpu.memory_space<vmem>>, vector<20x1xf32>
    tpu.vector_store %arg9[%c60_16, %c255], %12 {strides = array<i32>} : memref<100x256xf32, #tpu.memory_space<vmem>>, vector<20x1xf32>,
    %c0_17 = arith.constant 0 : index
    %c2_18 = arith.constant 2 : index
    %14 = vector.load %arg1[%c0_17, %c2_18] : memref<20x256xf32, #tpu.memory_space<vmem>>, vector<20x254xf32>
    %c80 = arith.constant 80 : index
    %c0_19 = arith.constant 0 : index
    %15 = vector.load %arg9[%c80, %c0_19] : memref<100x256xf32, #tpu.memory_space<vmem>>, vector<20x254xf32>
    tpu.vector_store %arg9[%c80, %c0_19], %14 {strides = array<i32>} : memref<100x256xf32, #tpu.memory_space<vmem>>, vector<20x254xf32>,
    %cst_20 = arith.constant 0.000000e+00 : f32
    %16 = vector.broadcast %cst_20 : f32 to vector<20x2xf32>
    %c80_21 = arith.constant 80 : index
    %c254 = arith.constant 254 : index
    %17 = vector.load %arg9[%c80_21, %c254] : memref<100x256xf32, #tpu.memory_space<vmem>>, vector<20x2xf32>
    tpu.vector_store %arg9[%c80_21, %c254], %16 {strides = array<i32>} : memref<100x256xf32, #tpu.memory_space<vmem>>, vector<20x2xf32>,
    %cst_22 = arith.constant 0.000000e+00 : f32
    %18 = vector.broadcast %cst_22 : f32 to vector<16x256xf32>
    %c0_23 = arith.constant 0 : index
    %c0_24 = arith.constant 0 : index
    %19 = vector.load %arg9[%c0_23, %c0_24] : memref<100x256xf32, #tpu.memory_space<vmem>>, vector<16x256xf32>
    %c0_25 = arith.constant 0 : index
    %c0_26 = arith.constant 0 : index
    %20 = vector.load %arg2[%c0_25, %c0_26] : memref<25x256xf32, #tpu.memory_space<vmem>>, vector<1x256xf32>
    %21 = vector.broadcast %20 : vector<1x256xf32> to vector<16x256xf32>
    %22 = arith.mulf %19, %21 : vector<16x256xf32>
    %23 = arith.addf %18, %22 : vector<16x256xf32>
    %c20_27 = arith.constant 20 : index
    %c0_28 = arith.constant 0 : index
    %24 = vector.load %arg9[%c20_27, %c0_28] : memref<100x256xf32, #tpu.memory_space<vmem>>, vector<16x256xf32>
    %c1_29 = arith.constant 1 : index
    %c0_30 = arith.constant 0 : index
    %25 = vector.load %arg2[%c1_29, %c0_30] : memref<25x256xf32, #tpu.memory_space<vmem>>, vector<1x256xf32>
    %26 = vector.broadcast %25 : vector<1x256xf32> to vector<16x256xf32>
    %27 = arith.mulf %24, %26 : vector<16x256xf32>
    %28 = arith.addf %23, %27 : vector<16x256xf32>
    %c40_31 = arith.constant 40 : index
    %c0_32 = arith.constant 0 : index
    %29 = vector.load %arg9[%c40_31, %c0_32] : memref<100x256xf32, #tpu.memory_space<vmem>>, vector<16x256xf32>
    %c2_33 = arith.constant 2 : index
    %c0_34 = arith.constant 0 : index
    %30 = vector.load %arg2[%c2_33, %c0_34] : memref<25x256xf32, #tpu.memory_space<vmem>>, vector<1x256xf32>
    %31 = vector.broadcast %30 : vector<1x256xf32> to vector<16x256xf32>
    %32 = arith.mulf %29, %31 : vector<16x256xf32>
    %33 = arith.addf %28, %32 : vector<16x256xf32>
    %c60_35 = arith.constant 60 : index
    %c0_36 = arith.constant 0 : index
    %34 = vector.load %arg9[%c60_35, %c0_36] : memref<100x256xf32, #tpu.memory_space<vmem>>, vector<16x256xf32>
    %c3 = arith.constant 3 : index
    %c0_37 = arith.constant 0 : index
    %35 = vector.load %arg2[%c3, %c0_37] : memref<25x256xf32, #tpu.memory_space<vmem>>, vector<1x256xf32>
    %36 = vector.broadcast %35 : vector<1x256xf32> to vector<16x256xf32>
    %37 = arith.mulf %34, %36 : vector<16x256xf32>
    %38 = arith.addf %33, %37 : vector<16x256xf32>
    %c80_38 = arith.constant 80 : index
    %c0_39 = arith.constant 0 : index
    %39 = vector.load %arg9[%c80_38, %c0_39] : memref<100x256xf32, #tpu.memory_space<vmem>>, vector<16x256xf32>
    %c4 = arith.constant 4 : index
    %c0_40 = arith.constant 0 : index
    %40 = vector.load %arg2[%c4, %c0_40] : memref<25x256xf32, #tpu.memory_space<vmem>>, vector<1x256xf32>
    %41 = vector.broadcast %40 : vector<1x256xf32> to vector<16x256xf32>
    %42 = arith.mulf %39, %41 : vector<16x256xf32>
    %43 = arith.addf %38, %42 : vector<16x256xf32>
    %c1_41 = arith.constant 1 : index
    %c0_42 = arith.constant 0 : index
    %44 = vector.load %arg9[%c1_41, %c0_42] : memref<100x256xf32, #tpu.memory_space<vmem>>, vector<16x256xf32>
    %c5 = arith.constant 5 : index
    %c0_43 = arith.constant 0 : index
    %45 = vector.load %arg2[%c5, %c0_43] : memref<25x256xf32, #tpu.memory_space<vmem>>, vector<1x256xf32>
    %46 = vector.broadcast %45 : vector<1x256xf32> to vector<16x256xf32>
    %47 = arith.mulf %44, %46 : vector<16x256xf32>
    %48 = arith.addf %43, %47 : vector<16x256xf32>
    %c21 = arith.constant 21 : index
    %c0_44 = arith.constant 0 : index
    %49 = vector.load %arg9[%c21, %c0_44] : memref<100x256xf32, #tpu.memory_space<vmem>>, vector<16x256xf32>
    %c6 = arith.constant 6 : index
    %c0_45 = arith.constant 0 : index
    %50 = vector.load %arg2[%c6, %c0_45] : memref<25x256xf32, #tpu.memory_space<vmem>>, vector<1x256xf32>
    %51 = vector.broadcast %50 : vector<1x256xf32> to vector<16x256xf32>
    %52 = arith.mulf %49, %51 : vector<16x256xf32>
    %53 = arith.addf %48, %52 : vector<16x256xf32>
    %c41 = arith.constant 41 : index
    %c0_46 = arith.constant 0 : index
    %54 = vector.load %arg9[%c41, %c0_46] : memref<100x256xf32, #tpu.memory_space<vmem>>, vector<16x256xf32>
    %c7 = arith.constant 7 : index
    %c0_47 = arith.constant 0 : index
    %55 = vector.load %arg2[%c7, %c0_47] : memref<25x256xf32, #tpu.memory_space<vmem>>, vector<1x256xf32>
    %56 = vector.broadcast %55 : vector<1x256xf32> to vector<16x256xf32>
    %57 = arith.mulf %54, %56 : vector<16x256xf32>
    %58 = arith.addf %53, %57 : vector<16x256xf32>
    %c61 = arith.constant 61 : index
    %c0_48 = arith.constant 0 : index
    %59 = vector.load %arg9[%c61, %c0_48] : memref<100x256xf32, #tpu.memory_space<vmem>>, vector<16x256xf32>
    %c8 = arith.constant 8 : index
    %c0_49 = arith.constant 0 : index
    %60 = vector.load %arg2[%c8, %c0_49] : memref<25x256xf32, #tpu.memory_space<vmem>>, vector<1x256xf32>
    %61 = vector.broadcast %60 : vector<1x256xf32> to vector<16x256xf32>
    %62 = arith.mulf %59, %61 : vector<16x256xf32>
    %63 = arith.addf %58, %62 : vector<16x256xf32>
    %c81 = arith.constant 81 : index
    %c0_50 = arith.constant 0 : index
    %64 = vector.load %arg9[%c81, %c0_50] : memref<100x256xf32, #tpu.memory_space<vmem>>, vector<16x256xf32>
    %c9 = arith.constant 9 : index
    %c0_51 = arith.constant 0 : index
    %65 = vector.load %arg2[%c9, %c0_51] : memref<25x256xf32, #tpu.memory_space<vmem>>, vector<1x256xf32>
    %66 = vector.broadcast %65 : vector<1x256xf32> to vector<16x256xf32>
    %67 = arith.mulf %64, %66 : vector<16x256xf32>
    %68 = arith.addf %63, %67 : vector<16x256xf32>
    %c2_52 = arith.constant 2 : index
    %c0_53 = arith.constant 0 : index
    %69 = vector.load %arg9[%c2_52, %c0_53] : memref<100x256xf32, #tpu.memory_space<vmem>>, vector<16x256xf32>
    %c10 = arith.constant 10 : index
    %c0_54 = arith.constant 0 : index
    %70 = vector.load %arg2[%c10, %c0_54] : memref<25x256xf32, #tpu.memory_space<vmem>>, vector<1x256xf32>
    %71 = vector.broadcast %70 : vector<1x256xf32> to vector<16x256xf32>
    %72 = arith.mulf %69, %71 : vector<16x256xf32>
    %73 = arith.addf %68, %72 : vector<16x256xf32>
    %c22 = arith.constant 22 : index
    %c0_55 = arith.constant 0 : index
    %74 = vector.load %arg9[%c22, %c0_55] : memref<100x256xf32, #tpu.memory_space<vmem>>, vector<16x256xf32>
    %c11 = arith.constant 11 : index
    %c0_56 = arith.constant 0 : index
    %75 = vector.load %arg2[%c11, %c0_56] : memref<25x256xf32, #tpu.memory_space<vmem>>, vector<1x256xf32>
    %76 = vector.broadcast %75 : vector<1x256xf32> to vector<16x256xf32>
    %77 = arith.mulf %74, %76 : vector<16x256xf32>
    %78 = arith.addf %73, %77 : vector<16x256xf32>
    %c42 = arith.constant 42 : index
    %c0_57 = arith.constant 0 : index
    %79 = vector.load %arg9[%c42, %c0_57] : memref<100x256xf32, #tpu.memory_space<vmem>>, vector<16x256xf32>
    %c12 = arith.constant 12 : index
    %c0_58 = arith.constant 0 : index
    %80 = vector.load %arg2[%c12, %c0_58] : memref<25x256xf32, #tpu.memory_space<vmem>>, vector<1x256xf32>
    %81 = vector.broadcast %80 : vector<1x256xf32> to vector<16x256xf32>
    %82 = arith.mulf %79, %81 : vector<16x256xf32>
    %83 = arith.addf %78, %82 : vector<16x256xf32>
    %c62 = arith.constant 62 : index
    %c0_59 = arith.constant 0 : index
    %84 = vector.load %arg9[%c62, %c0_59] : memref<100x256xf32, #tpu.memory_space<vmem>>, vector<16x256xf32>
    %c13 = arith.constant 13 : index
    %c0_60 = arith.constant 0 : index
    %85 = vector.load %arg2[%c13, %c0_60] : memref<25x256xf32, #tpu.memory_space<vmem>>, vector<1x256xf32>
    %86 = vector.broadcast %85 : vector<1x256xf32> to vector<16x256xf32>
    %87 = arith.mulf %84, %86 : vector<16x256xf32>
    %88 = arith.addf %83, %87 : vector<16x256xf32>
    %c82 = arith.constant 82 : index
    %c0_61 = arith.constant 0 : index
    %89 = vector.load %arg9[%c82, %c0_61] : memref<100x256xf32, #tpu.memory_space<vmem>>, vector<16x256xf32>
    %c14 = arith.constant 14 : index
    %c0_62 = arith.constant 0 : index
    %90 = vector.load %arg2[%c14, %c0_62] : memref<25x256xf32, #tpu.memory_space<vmem>>, vector<1x256xf32>
    %91 = vector.broadcast %90 : vector<1x256xf32> to vector<16x256xf32>
    %92 = arith.mulf %89, %91 : vector<16x256xf32>
    %93 = arith.addf %88, %92 : vector<16x256xf32>
    %c3_63 = arith.constant 3 : index
    %c0_64 = arith.constant 0 : index
    %94 = vector.load %arg9[%c3_63, %c0_64] : memref<100x256xf32, #tpu.memory_space<vmem>>, vector<16x256xf32>
    %c15 = arith.constant 15 : index
    %c0_65 = arith.constant 0 : index
    %95 = vector.load %arg2[%c15, %c0_65] : memref<25x256xf32, #tpu.memory_space<vmem>>, vector<1x256xf32>
    %96 = vector.broadcast %95 : vector<1x256xf32> to vector<16x256xf32>
    %97 = arith.mulf %94, %96 : vector<16x256xf32>
    %98 = arith.addf %93, %97 : vector<16x256xf32>
    %c23 = arith.constant 23 : index
    %c0_66 = arith.constant 0 : index
    %99 = vector.load %arg9[%c23, %c0_66] : memref<100x256xf32, #tpu.memory_space<vmem>>, vector<16x256xf32>
    %c16 = arith.constant 16 : index
    %c0_67 = arith.constant 0 : index
    %100 = vector.load %arg2[%c16, %c0_67] : memref<25x256xf32, #tpu.memory_space<vmem>>, vector<1x256xf32>
    %101 = vector.broadcast %100 : vector<1x256xf32> to vector<16x256xf32>
    %102 = arith.mulf %99, %101 : vector<16x256xf32>
    %103 = arith.addf %98, %102 : vector<16x256xf32>
    %c43 = arith.constant 43 : index
    %c0_68 = arith.constant 0 : index
    %104 = vector.load %arg9[%c43, %c0_68] : memref<100x256xf32, #tpu.memory_space<vmem>>, vector<16x256xf32>
    %c17 = arith.constant 17 : index
    %c0_69 = arith.constant 0 : index
    %105 = vector.load %arg2[%c17, %c0_69] : memref<25x256xf32, #tpu.memory_space<vmem>>, vector<1x256xf32>
    %106 = vector.broadcast %105 : vector<1x256xf32> to vector<16x256xf32>
    %107 = arith.mulf %104, %106 : vector<16x256xf32>
    %108 = arith.addf %103, %107 : vector<16x256xf32>
    %c63 = arith.constant 63 : index
    %c0_70 = arith.constant 0 : index
    %109 = vector.load %arg9[%c63, %c0_70] : memref<100x256xf32, #tpu.memory_space<vmem>>, vector<16x256xf32>
    %c18 = arith.constant 18 : index
    %c0_71 = arith.constant 0 : index
    %110 = vector.load %arg2[%c18, %c0_71] : memref<25x256xf32, #tpu.memory_space<vmem>>, vector<1x256xf32>
    %111 = vector.broadcast %110 : vector<1x256xf32> to vector<16x256xf32>
    %112 = arith.mulf %109, %111 : vector<16x256xf32>
    %113 = arith.addf %108, %112 : vector<16x256xf32>
    %c83 = arith.constant 83 : index
    %c0_72 = arith.constant 0 : index
    %114 = vector.load %arg9[%c83, %c0_72] : memref<100x256xf32, #tpu.memory_space<vmem>>, vector<16x256xf32>
    %c19 = arith.constant 19 : index
    %c0_73 = arith.constant 0 : index
    %115 = vector.load %arg2[%c19, %c0_73] : memref<25x256xf32, #tpu.memory_space<vmem>>, vector<1x256xf32>
    %116 = vector.broadcast %115 : vector<1x256xf32> to vector<16x256xf32>
    %117 = arith.mulf %114, %116 : vector<16x256xf32>
    %118 = arith.addf %113, %117 : vector<16x256xf32>
    %c4_74 = arith.constant 4 : index
    %c0_75 = arith.constant 0 : index
    %119 = vector.load %arg9[%c4_74, %c0_75] : memref<100x256xf32, #tpu.memory_space<vmem>>, vector<16x256xf32>
    %c20_76 = arith.constant 20 : index
    %c0_77 = arith.constant 0 : index
    %120 = vector.load %arg2[%c20_76, %c0_77] : memref<25x256xf32, #tpu.memory_space<vmem>>, vector<1x256xf32>
    %121 = vector.broadcast %120 : vector<1x256xf32> to vector<16x256xf32>
    %122 = arith.mulf %119, %121 : vector<16x256xf32>
    %123 = arith.addf %118, %122 : vector<16x256xf32>
    %c24 = arith.constant 24 : index
    %c0_78 = arith.constant 0 : index
    %124 = vector.load %arg9[%c24, %c0_78] : memref<100x256xf32, #tpu.memory_space<vmem>>, vector<16x256xf32>
    %c21_79 = arith.constant 21 : index
    %c0_80 = arith.constant 0 : index
    %125 = vector.load %arg2[%c21_79, %c0_80] : memref<25x256xf32, #tpu.memory_space<vmem>>, vector<1x256xf32>
    %126 = vector.broadcast %125 : vector<1x256xf32> to vector<16x256xf32>
    %127 = arith.mulf %124, %126 : vector<16x256xf32>
    %128 = arith.addf %123, %127 : vector<16x256xf32>
    %c44 = arith.constant 44 : index
    %c0_81 = arith.constant 0 : index
    %129 = vector.load %arg9[%c44, %c0_81] : memref<100x256xf32, #tpu.memory_space<vmem>>, vector<16x256xf32>
    %c22_82 = arith.constant 22 : index
    %c0_83 = arith.constant 0 : index
    %130 = vector.load %arg2[%c22_82, %c0_83] : memref<25x256xf32, #tpu.memory_space<vmem>>, vector<1x256xf32>
    %131 = vector.broadcast %130 : vector<1x256xf32> to vector<16x256xf32>
    %132 = arith.mulf %129, %131 : vector<16x256xf32>
    %133 = arith.addf %128, %132 : vector<16x256xf32>
    %c64 = arith.constant 64 : index
    %c0_84 = arith.constant 0 : index
    %134 = vector.load %arg9[%c64, %c0_84] : memref<100x256xf32, #tpu.memory_space<vmem>>, vector<16x256xf32>
    %c23_85 = arith.constant 23 : index
    %c0_86 = arith.constant 0 : index
    %135 = vector.load %arg2[%c23_85, %c0_86] : memref<25x256xf32, #tpu.memory_space<vmem>>, vector<1x256xf32>
    %136 = vector.broadcast %135 : vector<1x256xf32> to vector<16x256xf32>
    %137 = arith.mulf %134, %136 : vector<16x256xf32>
    %138 = arith.addf %133, %137 : vector<16x256xf32>
    %c84 = arith.constant 84 : index
    %c0_87 = arith.constant 0 : index
    %139 = vector.load %arg9[%c84, %c0_87] : memref<100x256xf32, #tpu.memory_space<vmem>>, vector<16x256xf32>
    %c24_88 = arith.constant 24 : index
    %c0_89 = arith.constant 0 : index
    %140 = vector.load %arg2[%c24_88, %c0_89] : memref<25x256xf32, #tpu.memory_space<vmem>>, vector<1x256xf32>
    %141 = vector.broadcast %140 : vector<1x256xf32> to vector<16x256xf32>
    %142 = arith.mulf %139, %141 : vector<16x256xf32>
    %143 = arith.addf %138, %142 : vector<16x256xf32>
    %c0_90 = arith.constant 0 : index
    %c0_91 = arith.constant 0 : index
    %144 = vector.load %arg3[%c0_90, %c0_91] : memref<1x256xf32, #tpu.memory_space<vmem>>, vector<1x256xf32>
    %145 = vector.broadcast %144 : vector<1x256xf32> to vector<16x256xf32>
    %146 = arith.addf %143, %145 : vector<16x256xf32>
    %cst_92 = arith.constant 0.000000e+00 : f32
    %147 = vector.broadcast %cst_92 : f32 to vector<16x256xf32>
    %148 = arith.maximumf %146, %147 : vector<16x256xf32>
    %c0_93 = arith.constant 0 : index
    %c0_94 = arith.constant 0 : index
    %149 = vector.load %arg6[%c0_93, %c0_94] : memref<1x256xf32, #tpu.memory_space<vmem>>, vector<1x256xf32>
    %150 = vector.broadcast %149 : vector<1x256xf32> to vector<16x256xf32>
    %151 = arith.mulf %148, %150 : vector<16x256xf32>
    %cst_95 = arith.constant 0.000000e+00 : f32
    %152 = vector.broadcast %cst_95 : f32 to vector<2x256xf32>
    %c0_96 = arith.constant 0 : index
    %c0_97 = arith.constant 0 : index
    %153 = vector.load %arg10[%c0_96, %c0_97] : memref<20x256xf32, #tpu.memory_space<vmem>>, vector<2x256xf32>
    tpu.vector_store %arg10[%c0_96, %c0_97], %152 {strides = array<i32>} : memref<20x256xf32, #tpu.memory_space<vmem>>, vector<2x256xf32>,
    %c18_98 = arith.constant 18 : index
    %c0_99 = arith.constant 0 : index
    %154 = vector.load %arg10[%c18_98, %c0_99] : memref<20x256xf32, #tpu.memory_space<vmem>>, vector<2x256xf32>
    tpu.vector_store %arg10[%c18_98, %c0_99], %152 {strides = array<i32>} : memref<20x256xf32, #tpu.memory_space<vmem>>, vector<2x256xf32>,
    %c2_100 = arith.constant 2 : index
    %c0_101 = arith.constant 0 : index
    %155 = vector.load %arg10[%c2_100, %c0_101] : memref<20x256xf32, #tpu.memory_space<vmem>>, vector<16x256xf32>
    tpu.vector_store %arg10[%c2_100, %c0_101], %151 {strides = array<i32>} : memref<20x256xf32, #tpu.memory_space<vmem>>, vector<16x256xf32>,
    %c0_102 = arith.constant 0 : index
    %c0_103 = arith.constant 0 : index
    %156 = vector.load %arg10[%c0_102, %c0_103] : memref<20x256xf32, #tpu.memory_space<vmem>>, vector<20x254xf32>
    %c0_104 = arith.constant 0 : index
    %c2_105 = arith.constant 2 : index
    %157 = vector.load %arg9[%c0_104, %c2_105] : memref<100x256xf32, #tpu.memory_space<vmem>>, vector<20x254xf32>
    tpu.vector_store %arg9[%c0_104, %c2_105], %156 {strides = array<i32>} : memref<100x256xf32, #tpu.memory_space<vmem>>, vector<20x254xf32>,
    %cst_106 = arith.constant 0.000000e+00 : f32
    %158 = vector.broadcast %cst_106 : f32 to vector<20x2xf32>
    %c0_107 = arith.constant 0 : index
    %c0_108 = arith.constant 0 : index
    %159 = vector.load %arg9[%c0_107, %c0_108] : memref<100x256xf32, #tpu.memory_space<vmem>>, vector<20x2xf32>
    tpu.vector_store %arg9[%c0_107, %c0_108], %158 {strides = array<i32>} : memref<100x256xf32, #tpu.memory_space<vmem>>, vector<20x2xf32>,
    %c0_109 = arith.constant 0 : index
    %c0_110 = arith.constant 0 : index
    %160 = vector.load %arg10[%c0_109, %c0_110] : memref<20x256xf32, #tpu.memory_space<vmem>>, vector<20x255xf32>
    %c20_111 = arith.constant 20 : index
    %c1_112 = arith.constant 1 : index
    %161 = vector.load %arg9[%c20_111, %c1_112] : memref<100x256xf32, #tpu.memory_space<vmem>>, vector<20x255xf32>
    tpu.vector_store %arg9[%c20_111, %c1_112], %160 {strides = array<i32>} : memref<100x256xf32, #tpu.memory_space<vmem>>, vector<20x255xf32>,
    %cst_113 = arith.constant 0.000000e+00 : f32
    %162 = vector.broadcast %cst_113 : f32 to vector<20x1xf32>
    %c20_114 = arith.constant 20 : index
    %c0_115 = arith.constant 0 : index
    %163 = vector.load %arg9[%c20_114, %c0_115] : memref<100x256xf32, #tpu.memory_space<vmem>>, vector<20x1xf32>
    tpu.vector_store %arg9[%c20_114, %c0_115], %162 {strides = array<i32>} : memref<100x256xf32, #tpu.memory_space<vmem>>, vector<20x1xf32>,
    %c0_116 = arith.constant 0 : index
    %c0_117 = arith.constant 0 : index
    %164 = vector.load %arg10[%c0_116, %c0_117] : memref<20x256xf32, #tpu.memory_space<vmem>>, vector<20x256xf32>
    %c40_118 = arith.constant 40 : index
    %c0_119 = arith.constant 0 : index
    %165 = vector.load %arg9[%c40_118, %c0_119] : memref<100x256xf32, #tpu.memory_space<vmem>>, vector<20x256xf32>
    tpu.vector_store %arg9[%c40_118, %c0_119], %164 {strides = array<i32>} : memref<100x256xf32, #tpu.memory_space<vmem>>, vector<20x256xf32>,
    %c0_120 = arith.constant 0 : index
    %c1_121 = arith.constant 1 : index
    %166 = vector.load %arg10[%c0_120, %c1_121] : memref<20x256xf32, #tpu.memory_space<vmem>>, vector<20x255xf32>
    %c60_122 = arith.constant 60 : index
    %c0_123 = arith.constant 0 : index
    %167 = vector.load %arg9[%c60_122, %c0_123] : memref<100x256xf32, #tpu.memory_space<vmem>>, vector<20x255xf32>
    tpu.vector_store %arg9[%c60_122, %c0_123], %166 {strides = array<i32>} : memref<100x256xf32, #tpu.memory_space<vmem>>, vector<20x255xf32>,
    %cst_124 = arith.constant 0.000000e+00 : f32
    %168 = vector.broadcast %cst_124 : f32 to vector<20x1xf32>
    %c60_125 = arith.constant 60 : index
    %c255_126 = arith.constant 255 : index
    %169 = vector.load %arg9[%c60_125, %c255_126] : memref<100x256xf32, #tpu.memory_space<vmem>>, vector<20x1xf32>
    tpu.vector_store %arg9[%c60_125, %c255_126], %168 {strides = array<i32>} : memref<100x256xf32, #tpu.memory_space<vmem>>, vector<20x1xf32>,
    %c0_127 = arith.constant 0 : index
    %c2_128 = arith.constant 2 : index
    %170 = vector.load %arg10[%c0_127, %c2_128] : memref<20x256xf32, #tpu.memory_space<vmem>>, vector<20x254xf32>
    %c80_129 = arith.constant 80 : index
    %c0_130 = arith.constant 0 : index
    %171 = vector.load %arg9[%c80_129, %c0_130] : memref<100x256xf32, #tpu.memory_space<vmem>>, vector<20x254xf32>
    tpu.vector_store %arg9[%c80_129, %c0_130], %170 {strides = array<i32>} : memref<100x256xf32, #tpu.memory_space<vmem>>, vector<20x254xf32>,
    %cst_131 = arith.constant 0.000000e+00 : f32
    %172 = vector.broadcast %cst_131 : f32 to vector<20x2xf32>
    %c80_132 = arith.constant 80 : index
    %c254_133 = arith.constant 254 : index
    %173 = vector.load %arg9[%c80_132, %c254_133] : memref<100x256xf32, #tpu.memory_space<vmem>>, vector<20x2xf32>
    tpu.vector_store %arg9[%c80_132, %c254_133], %172 {strides = array<i32>} : memref<100x256xf32, #tpu.memory_space<vmem>>, vector<20x2xf32>,
    %cst_134 = arith.constant 0.000000e+00 : f32
    %174 = vector.broadcast %cst_134 : f32 to vector<16x256xf32>
    %c0_135 = arith.constant 0 : index
    %c0_136 = arith.constant 0 : index
    %175 = vector.load %arg9[%c0_135, %c0_136] : memref<100x256xf32, #tpu.memory_space<vmem>>, vector<16x256xf32>
    %c0_137 = arith.constant 0 : index
    %c0_138 = arith.constant 0 : index
    %176 = vector.load %arg4[%c0_137, %c0_138] : memref<25x256xf32, #tpu.memory_space<vmem>>, vector<1x256xf32>
    %177 = vector.broadcast %176 : vector<1x256xf32> to vector<16x256xf32>
    %178 = arith.mulf %175, %177 : vector<16x256xf32>
    %179 = arith.addf %174, %178 : vector<16x256xf32>
    %c20_139 = arith.constant 20 : index
    %c0_140 = arith.constant 0 : index
    %180 = vector.load %arg9[%c20_139, %c0_140] : memref<100x256xf32, #tpu.memory_space<vmem>>, vector<16x256xf32>
    %c1_141 = arith.constant 1 : index
    %c0_142 = arith.constant 0 : index
    %181 = vector.load %arg4[%c1_141, %c0_142] : memref<25x256xf32, #tpu.memory_space<vmem>>, vector<1x256xf32>
    %182 = vector.broadcast %181 : vector<1x256xf32> to vector<16x256xf32>
    %183 = arith.mulf %180, %182 : vector<16x256xf32>
    %184 = arith.addf %179, %183 : vector<16x256xf32>
    %c40_143 = arith.constant 40 : index
    %c0_144 = arith.constant 0 : index
    %185 = vector.load %arg9[%c40_143, %c0_144] : memref<100x256xf32, #tpu.memory_space<vmem>>, vector<16x256xf32>
    %c2_145 = arith.constant 2 : index
    %c0_146 = arith.constant 0 : index
    %186 = vector.load %arg4[%c2_145, %c0_146] : memref<25x256xf32, #tpu.memory_space<vmem>>, vector<1x256xf32>
    %187 = vector.broadcast %186 : vector<1x256xf32> to vector<16x256xf32>
    %188 = arith.mulf %185, %187 : vector<16x256xf32>
    %189 = arith.addf %184, %188 : vector<16x256xf32>
    %c60_147 = arith.constant 60 : index
    %c0_148 = arith.constant 0 : index
    %190 = vector.load %arg9[%c60_147, %c0_148] : memref<100x256xf32, #tpu.memory_space<vmem>>, vector<16x256xf32>
    %c3_149 = arith.constant 3 : index
    %c0_150 = arith.constant 0 : index
    %191 = vector.load %arg4[%c3_149, %c0_150] : memref<25x256xf32, #tpu.memory_space<vmem>>, vector<1x256xf32>
    %192 = vector.broadcast %191 : vector<1x256xf32> to vector<16x256xf32>
    %193 = arith.mulf %190, %192 : vector<16x256xf32>
    %194 = arith.addf %189, %193 : vector<16x256xf32>
    %c80_151 = arith.constant 80 : index
    %c0_152 = arith.constant 0 : index
    %195 = vector.load %arg9[%c80_151, %c0_152] : memref<100x256xf32, #tpu.memory_space<vmem>>, vector<16x256xf32>
    %c4_153 = arith.constant 4 : index
    %c0_154 = arith.constant 0 : index
    %196 = vector.load %arg4[%c4_153, %c0_154] : memref<25x256xf32, #tpu.memory_space<vmem>>, vector<1x256xf32>
    %197 = vector.broadcast %196 : vector<1x256xf32> to vector<16x256xf32>
    %198 = arith.mulf %195, %197 : vector<16x256xf32>
    %199 = arith.addf %194, %198 : vector<16x256xf32>
    %c1_155 = arith.constant 1 : index
    %c0_156 = arith.constant 0 : index
    %200 = vector.load %arg9[%c1_155, %c0_156] : memref<100x256xf32, #tpu.memory_space<vmem>>, vector<16x256xf32>
    %c5_157 = arith.constant 5 : index
    %c0_158 = arith.constant 0 : index
    %201 = vector.load %arg4[%c5_157, %c0_158] : memref<25x256xf32, #tpu.memory_space<vmem>>, vector<1x256xf32>
    %202 = vector.broadcast %201 : vector<1x256xf32> to vector<16x256xf32>
    %203 = arith.mulf %200, %202 : vector<16x256xf32>
    %204 = arith.addf %199, %203 : vector<16x256xf32>
    %c21_159 = arith.constant 21 : index
    %c0_160 = arith.constant 0 : index
    %205 = vector.load %arg9[%c21_159, %c0_160] : memref<100x256xf32, #tpu.memory_space<vmem>>, vector<16x256xf32>
    %c6_161 = arith.constant 6 : index
    %c0_162 = arith.constant 0 : index
    %206 = vector.load %arg4[%c6_161, %c0_162] : memref<25x256xf32, #tpu.memory_space<vmem>>, vector<1x256xf32>
    %207 = vector.broadcast %206 : vector<1x256xf32> to vector<16x256xf32>
    %208 = arith.mulf %205, %207 : vector<16x256xf32>
    %209 = arith.addf %204, %208 : vector<16x256xf32>
    %c41_163 = arith.constant 41 : index
    %c0_164 = arith.constant 0 : index
    %210 = vector.load %arg9[%c41_163, %c0_164] : memref<100x256xf32, #tpu.memory_space<vmem>>, vector<16x256xf32>
    %c7_165 = arith.constant 7 : index
    %c0_166 = arith.constant 0 : index
    %211 = vector.load %arg4[%c7_165, %c0_166] : memref<25x256xf32, #tpu.memory_space<vmem>>, vector<1x256xf32>
    %212 = vector.broadcast %211 : vector<1x256xf32> to vector<16x256xf32>
    %213 = arith.mulf %210, %212 : vector<16x256xf32>
    %214 = arith.addf %209, %213 : vector<16x256xf32>
    %c61_167 = arith.constant 61 : index
    %c0_168 = arith.constant 0 : index
    %215 = vector.load %arg9[%c61_167, %c0_168] : memref<100x256xf32, #tpu.memory_space<vmem>>, vector<16x256xf32>
    %c8_169 = arith.constant 8 : index
    %c0_170 = arith.constant 0 : index
    %216 = vector.load %arg4[%c8_169, %c0_170] : memref<25x256xf32, #tpu.memory_space<vmem>>, vector<1x256xf32>
    %217 = vector.broadcast %216 : vector<1x256xf32> to vector<16x256xf32>
    %218 = arith.mulf %215, %217 : vector<16x256xf32>
    %219 = arith.addf %214, %218 : vector<16x256xf32>
    %c81_171 = arith.constant 81 : index
    %c0_172 = arith.constant 0 : index
    %220 = vector.load %arg9[%c81_171, %c0_172] : memref<100x256xf32, #tpu.memory_space<vmem>>, vector<16x256xf32>
    %c9_173 = arith.constant 9 : index
    %c0_174 = arith.constant 0 : index
    %221 = vector.load %arg4[%c9_173, %c0_174] : memref<25x256xf32, #tpu.memory_space<vmem>>, vector<1x256xf32>
    %222 = vector.broadcast %221 : vector<1x256xf32> to vector<16x256xf32>
    %223 = arith.mulf %220, %222 : vector<16x256xf32>
    %224 = arith.addf %219, %223 : vector<16x256xf32>
    %c2_175 = arith.constant 2 : index
    %c0_176 = arith.constant 0 : index
    %225 = vector.load %arg9[%c2_175, %c0_176] : memref<100x256xf32, #tpu.memory_space<vmem>>, vector<16x256xf32>
    %c10_177 = arith.constant 10 : index
    %c0_178 = arith.constant 0 : index
    %226 = vector.load %arg4[%c10_177, %c0_178] : memref<25x256xf32, #tpu.memory_space<vmem>>, vector<1x256xf32>
    %227 = vector.broadcast %226 : vector<1x256xf32> to vector<16x256xf32>
    %228 = arith.mulf %225, %227 : vector<16x256xf32>
    %229 = arith.addf %224, %228 : vector<16x256xf32>
    %c22_179 = arith.constant 22 : index
    %c0_180 = arith.constant 0 : index
    %230 = vector.load %arg9[%c22_179, %c0_180] : memref<100x256xf32, #tpu.memory_space<vmem>>, vector<16x256xf32>
    %c11_181 = arith.constant 11 : index
    %c0_182 = arith.constant 0 : index
    %231 = vector.load %arg4[%c11_181, %c0_182] : memref<25x256xf32, #tpu.memory_space<vmem>>, vector<1x256xf32>
    %232 = vector.broadcast %231 : vector<1x256xf32> to vector<16x256xf32>
    %233 = arith.mulf %230, %232 : vector<16x256xf32>
    %234 = arith.addf %229, %233 : vector<16x256xf32>
    %c42_183 = arith.constant 42 : index
    %c0_184 = arith.constant 0 : index
    %235 = vector.load %arg9[%c42_183, %c0_184] : memref<100x256xf32, #tpu.memory_space<vmem>>, vector<16x256xf32>
    %c12_185 = arith.constant 12 : index
    %c0_186 = arith.constant 0 : index
    %236 = vector.load %arg4[%c12_185, %c0_186] : memref<25x256xf32, #tpu.memory_space<vmem>>, vector<1x256xf32>
    %237 = vector.broadcast %236 : vector<1x256xf32> to vector<16x256xf32>
    %238 = arith.mulf %235, %237 : vector<16x256xf32>
    %239 = arith.addf %234, %238 : vector<16x256xf32>
    %c62_187 = arith.constant 62 : index
    %c0_188 = arith.constant 0 : index
    %240 = vector.load %arg9[%c62_187, %c0_188] : memref<100x256xf32, #tpu.memory_space<vmem>>, vector<16x256xf32>
    %c13_189 = arith.constant 13 : index
    %c0_190 = arith.constant 0 : index
    %241 = vector.load %arg4[%c13_189, %c0_190] : memref<25x256xf32, #tpu.memory_space<vmem>>, vector<1x256xf32>
    %242 = vector.broadcast %241 : vector<1x256xf32> to vector<16x256xf32>
    %243 = arith.mulf %240, %242 : vector<16x256xf32>
    %244 = arith.addf %239, %243 : vector<16x256xf32>
    %c82_191 = arith.constant 82 : index
    %c0_192 = arith.constant 0 : index
    %245 = vector.load %arg9[%c82_191, %c0_192] : memref<100x256xf32, #tpu.memory_space<vmem>>, vector<16x256xf32>
    %c14_193 = arith.constant 14 : index
    %c0_194 = arith.constant 0 : index
    %246 = vector.load %arg4[%c14_193, %c0_194] : memref<25x256xf32, #tpu.memory_space<vmem>>, vector<1x256xf32>
    %247 = vector.broadcast %246 : vector<1x256xf32> to vector<16x256xf32>
    %248 = arith.mulf %245, %247 : vector<16x256xf32>
    %249 = arith.addf %244, %248 : vector<16x256xf32>
    %c3_195 = arith.constant 3 : index
    %c0_196 = arith.constant 0 : index
    %250 = vector.load %arg9[%c3_195, %c0_196] : memref<100x256xf32, #tpu.memory_space<vmem>>, vector<16x256xf32>
    %c15_197 = arith.constant 15 : index
    %c0_198 = arith.constant 0 : index
    %251 = vector.load %arg4[%c15_197, %c0_198] : memref<25x256xf32, #tpu.memory_space<vmem>>, vector<1x256xf32>
    %252 = vector.broadcast %251 : vector<1x256xf32> to vector<16x256xf32>
    %253 = arith.mulf %250, %252 : vector<16x256xf32>
    %254 = arith.addf %249, %253 : vector<16x256xf32>
    %c23_199 = arith.constant 23 : index
    %c0_200 = arith.constant 0 : index
    %255 = vector.load %arg9[%c23_199, %c0_200] : memref<100x256xf32, #tpu.memory_space<vmem>>, vector<16x256xf32>
    %c16_201 = arith.constant 16 : index
    %c0_202 = arith.constant 0 : index
    %256 = vector.load %arg4[%c16_201, %c0_202] : memref<25x256xf32, #tpu.memory_space<vmem>>, vector<1x256xf32>
    %257 = vector.broadcast %256 : vector<1x256xf32> to vector<16x256xf32>
    %258 = arith.mulf %255, %257 : vector<16x256xf32>
    %259 = arith.addf %254, %258 : vector<16x256xf32>
    %c43_203 = arith.constant 43 : index
    %c0_204 = arith.constant 0 : index
    %260 = vector.load %arg9[%c43_203, %c0_204] : memref<100x256xf32, #tpu.memory_space<vmem>>, vector<16x256xf32>
    %c17_205 = arith.constant 17 : index
    %c0_206 = arith.constant 0 : index
    %261 = vector.load %arg4[%c17_205, %c0_206] : memref<25x256xf32, #tpu.memory_space<vmem>>, vector<1x256xf32>
    %262 = vector.broadcast %261 : vector<1x256xf32> to vector<16x256xf32>
    %263 = arith.mulf %260, %262 : vector<16x256xf32>
    %264 = arith.addf %259, %263 : vector<16x256xf32>
    %c63_207 = arith.constant 63 : index
    %c0_208 = arith.constant 0 : index
    %265 = vector.load %arg9[%c63_207, %c0_208] : memref<100x256xf32, #tpu.memory_space<vmem>>, vector<16x256xf32>
    %c18_209 = arith.constant 18 : index
    %c0_210 = arith.constant 0 : index
    %266 = vector.load %arg4[%c18_209, %c0_210] : memref<25x256xf32, #tpu.memory_space<vmem>>, vector<1x256xf32>
    %267 = vector.broadcast %266 : vector<1x256xf32> to vector<16x256xf32>
    %268 = arith.mulf %265, %267 : vector<16x256xf32>
    %269 = arith.addf %264, %268 : vector<16x256xf32>
    %c83_211 = arith.constant 83 : index
    %c0_212 = arith.constant 0 : index
    %270 = vector.load %arg9[%c83_211, %c0_212] : memref<100x256xf32, #tpu.memory_space<vmem>>, vector<16x256xf32>
    %c19_213 = arith.constant 19 : index
    %c0_214 = arith.constant 0 : index
    %271 = vector.load %arg4[%c19_213, %c0_214] : memref<25x256xf32, #tpu.memory_space<vmem>>, vector<1x256xf32>
    %272 = vector.broadcast %271 : vector<1x256xf32> to vector<16x256xf32>
    %273 = arith.mulf %270, %272 : vector<16x256xf32>
    %274 = arith.addf %269, %273 : vector<16x256xf32>
    %c4_215 = arith.constant 4 : index
    %c0_216 = arith.constant 0 : index
    %275 = vector.load %arg9[%c4_215, %c0_216] : memref<100x256xf32, #tpu.memory_space<vmem>>, vector<16x256xf32>
    %c20_217 = arith.constant 20 : index
    %c0_218 = arith.constant 0 : index
    %276 = vector.load %arg4[%c20_217, %c0_218] : memref<25x256xf32, #tpu.memory_space<vmem>>, vector<1x256xf32>
    %277 = vector.broadcast %276 : vector<1x256xf32> to vector<16x256xf32>
    %278 = arith.mulf %275, %277 : vector<16x256xf32>
    %279 = arith.addf %274, %278 : vector<16x256xf32>
    %c24_219 = arith.constant 24 : index
    %c0_220 = arith.constant 0 : index
    %280 = vector.load %arg9[%c24_219, %c0_220] : memref<100x256xf32, #tpu.memory_space<vmem>>, vector<16x256xf32>
    %c21_221 = arith.constant 21 : index
    %c0_222 = arith.constant 0 : index
    %281 = vector.load %arg4[%c21_221, %c0_222] : memref<25x256xf32, #tpu.memory_space<vmem>>, vector<1x256xf32>
    %282 = vector.broadcast %281 : vector<1x256xf32> to vector<16x256xf32>
    %283 = arith.mulf %280, %282 : vector<16x256xf32>
    %284 = arith.addf %279, %283 : vector<16x256xf32>
    %c44_223 = arith.constant 44 : index
    %c0_224 = arith.constant 0 : index
    %285 = vector.load %arg9[%c44_223, %c0_224] : memref<100x256xf32, #tpu.memory_space<vmem>>, vector<16x256xf32>
    %c22_225 = arith.constant 22 : index
    %c0_226 = arith.constant 0 : index
    %286 = vector.load %arg4[%c22_225, %c0_226] : memref<25x256xf32, #tpu.memory_space<vmem>>, vector<1x256xf32>
    %287 = vector.broadcast %286 : vector<1x256xf32> to vector<16x256xf32>
    %288 = arith.mulf %285, %287 : vector<16x256xf32>
    %289 = arith.addf %284, %288 : vector<16x256xf32>
    %c64_227 = arith.constant 64 : index
    %c0_228 = arith.constant 0 : index
    %290 = vector.load %arg9[%c64_227, %c0_228] : memref<100x256xf32, #tpu.memory_space<vmem>>, vector<16x256xf32>
    %c23_229 = arith.constant 23 : index
    %c0_230 = arith.constant 0 : index
    %291 = vector.load %arg4[%c23_229, %c0_230] : memref<25x256xf32, #tpu.memory_space<vmem>>, vector<1x256xf32>
    %292 = vector.broadcast %291 : vector<1x256xf32> to vector<16x256xf32>
    %293 = arith.mulf %290, %292 : vector<16x256xf32>
    %294 = arith.addf %289, %293 : vector<16x256xf32>
    %c84_231 = arith.constant 84 : index
    %c0_232 = arith.constant 0 : index
    %295 = vector.load %arg9[%c84_231, %c0_232] : memref<100x256xf32, #tpu.memory_space<vmem>>, vector<16x256xf32>
    %c24_233 = arith.constant 24 : index
    %c0_234 = arith.constant 0 : index
    %296 = vector.load %arg4[%c24_233, %c0_234] : memref<25x256xf32, #tpu.memory_space<vmem>>, vector<1x256xf32>
    %297 = vector.broadcast %296 : vector<1x256xf32> to vector<16x256xf32>
    %298 = arith.mulf %295, %297 : vector<16x256xf32>
    %299 = arith.addf %294, %298 : vector<16x256xf32>
    %c0_235 = arith.constant 0 : index
    %c0_236 = arith.constant 0 : index
    %300 = vector.load %arg5[%c0_235, %c0_236] : memref<1x256xf32, #tpu.memory_space<vmem>>, vector<1x256xf32>
    %301 = vector.broadcast %300 : vector<1x256xf32> to vector<16x256xf32>
    %302 = arith.addf %299, %301 : vector<16x256xf32>
    %c2_237 = arith.constant 2 : index
    %c0_238 = arith.constant 0 : index
    %303 = vector.load %arg1[%c2_237, %c0_238] : memref<20x256xf32, #tpu.memory_space<vmem>>, vector<16x256xf32>
    %c0_239 = arith.constant 0 : index
    %c0_240 = arith.constant 0 : index
    %304 = vector.load %arg7[%c0_239, %c0_240] : memref<16x256xf32, #tpu.memory_space<vmem>>, vector<16x256xf32>
    %305 = arith.mulf %302, %304 : vector<16x256xf32>
    %306 = arith.addf %303, %305 : vector<16x256xf32>
    %c0_241 = arith.constant 0 : index
    %c0_242 = arith.constant 0 : index
    %307 = vector.load %arg8[%c0_241, %c0_242] : memref<16x256xf32, #tpu.memory_space<vmem>>, vector<16x256xf32>
    tpu.vector_store %arg8[%c0_241, %c0_242], %306 {strides = array<i32>} : memref<16x256xf32, #tpu.memory_space<vmem>>, vector<16x256xf32>,
    return
  }
  func.func @transform_0(%arg0: i32) -> (i32, i32) {
    %c0_i32 = arith.constant 0 : i32
    %c0_i32_0 = arith.constant 0 : i32
    %c0_i32_1 = arith.constant 0 : i32
    return %c0_i32, %c0_i32_0 : i32, i32
  }
  func.func @transform_1(%arg0: i32) -> (i32, i32) {
    %c0_i32 = arith.constant 0 : i32
    %c0_i32_0 = arith.constant 0 : i32
    %c0_i32_1 = arith.constant 0 : i32
    return %c0_i32, %c0_i32_0 : i32, i32
  }
  func.func @transform_2(%arg0: i32) -> (i32, i32) {
    %c0_i32 = arith.constant 0 : i32
    %c0_i32_0 = arith.constant 0 : i32
    %c0_i32_1 = arith.constant 0 : i32
    return %c0_i32, %c0_i32_0 : i32, i32
  }
  func.func @transform_3(%arg0: i32) -> (i32, i32) {
    %c0_i32 = arith.constant 0 : i32
    %c0_i32_0 = arith.constant 0 : i32
    %c0_i32_1 = arith.constant 0 : i32
    return %c0_i32, %c0_i32_0 : i32, i32
  }
  func.func @transform_4(%arg0: i32) -> (i32, i32) {
    %c0_i32 = arith.constant 0 : i32
    %c0_i32_0 = arith.constant 0 : i32
    %c0_i32_1 = arith.constant 0 : i32
    return %c0_i32, %c0_i32_0 : i32, i32
  }
  func.func @transform_5(%arg0: i32) -> (i32, i32) {
    %c0_i32 = arith.constant 0 : i32
    %c0_i32_0 = arith.constant 0 : i32
    %c0_i32_1 = arith.constant 0 : i32
    return %c0_i32, %c0_i32_0 : i32, i32
  }
  func.func @transform_6(%arg0: i32) -> (i32, i32) {
    %c0_i32 = arith.constant 0 : i32
    %c0_i32_0 = arith.constant 0 : i32
    %c0_i32_1 = arith.constant 0 : i32
    return %c0_i32, %c0_i32_0 : i32, i32
  }
  func.func @transform_7(%arg0: i32) -> (i32, i32) {
    %c0_i32 = arith.constant 0 : i32
    %c0_i32_0 = arith.constant 0 : i32
    %c0_i32_1 = arith.constant 0 : i32
    return %c0_i32, %c0_i32_0 : i32, i32
  }
}

</mosaic_0001>

<llo_original>
// kernel: tile.8
$region0: #{tile.8}
  #allocation0 [shape = 's32[1]{0}', space=sflag, size = 0x4, scoped, tag = 'scoped memory for tile.8']
  %s0 = inlined_call_operand.vmem [shape: f32[32], index: 0, kind: input, shape index: {}]
  %s1 = inlined_call_operand.vmem [shape: f32[8,32], index: 1, kind: output, shape index: {}]
  // Predicated region
  $region2: #{tile.8} parent=0 // pred_check
    _
  $region3: #{tile.8} parent=0 // pred_check_branch
    %3 = sbr.rel (0) target = $region5
  $region4: #{tile.8} parent=0 // pred_region
    _
  $region5: #{tile.8} parent=0 // pred_fallthru
    _
  %v4 = vld [vmem:[%s0] ss:$0 sm:$0xff]
  %5 = vst [vmem:[%s1] sm:$0xff] %v4

// kernel: tile.9
$region0: #{tile.9}
  %s0 = inlined_call_operand.vmem [shape: f32[8,32], index: 0, kind: input, shape index: {}]
  %s1 = inlined_call_operand.vmem [shape: f32[1,256], index: 1, kind: output, shape index: {}]
  $region1: #{tile.9} parent=0
    #allocation0 [shape = 'u8[8192]{0}', space=vmem, size = 0x2000, scoped, tag = 'scoped mem for output reshape']
    %s2 = smov 3
    %v3 = vld [vmem:[%s0] ss:$4 sm:%s2]
    %vm4 = vcmask 261120
    %5 = vst.msk [vmem:[#allocation0] ss:$8 sm:$0x3] %vm4, %v3
    %s6 = scalar_lea.vmem %s0, 3
    %s7 = smov 3
    %v8 = vld [vmem:[%s6] ss:$4 sm:%s7]
    %9 = vrot.lane.b32.xlu0 %v8, 96
    %v10 = vpop.permute.xlu0 %9
    %vm11 = vcmask 1048320
    %12 = vst.msk [vmem:[#allocation0] ss:$8 sm:$0x3] %vm11, %v10
    %s13 = scalar_lea.vmem %s0, 2
    %s14 = smov 3
    %v15 = vld [vmem:[%s13] ss:$4 sm:%s14]
    %16 = vrot.lane.b32.xlu0 %v15, 64
    %v17 = vpop.permute.xlu0 %16
    %vm18 = vcmask 785920
    %19 = vst.msk [vmem:[#allocation0] ss:$8 sm:$0x3] %vm18, %v17
    %s20 = scalar_lea.vmem %s0, 1
    %s21 = smov 3
    %v22 = vld [vmem:[%s20] ss:$4 sm:%s21]
    %23 = vrot.lane.b32.xlu0 %v22, 32
    %v24 = vpop.permute.xlu0 %23
    %vm25 = vcmask 523520
    %26 = vst.msk [vmem:[#allocation0] ss:$8 sm:$0x3] %vm25, %v24
    %s28 = sshll.u32 1, 1
    %s29 = ssub.s32 %s28, 1
    %v31 = vld [vmem:[#allocation0] sm:%s29]
    %s32 = sshll.u32 1, 1
    %s33 = ssub.s32 %s32, 1
    %34 = vst [vmem:[%s1] sm:%s33] %v31
    %s35 = scalar_lea.vmem [#allocation0], 8
    %v36 = vld [vmem:[%s35] sm:%s29]
    %s37 = sshll.u32 1, 1
    %s38 = ssub.s32 %s37, 1
    %s39 = scalar_lea.vmem %s1, 1
    %40 = vst [vmem:[%s39] sm:%s38] %v36

// kernel: dis_layer_forward.1
$region0: #{dis_layer_forward.1}
  #allocation0 [shape = 'u32[]', space=smem, size = 0x4, offset = 0x4, fixed_abs, tag = 'smem constant byte address 0x4 - core index']
  #allocation1 [shape = 'u32[144,128]{1,0:T(1,128)}', space=vmem, size = 0x12000, scoped, tag = 'internal scratch']
  #allocation2 [shape = 'f32[100,256]{1,0:T(8,128)}', space=vmem, size = 0x1a000, scoped, tag = 'scratch operand']
  #allocation3 [shape = 'f32[20,256]{1,0:T(8,128)}', space=vmem, size = 0x6000, scoped, tag = 'scratch operand']
  %s0 = inlined_call_operand.vmem [shape: f32[20,256], index: 0, kind: input, shape index: {}]
  %s1 = inlined_call_operand.vmem [shape: f32[25,256], index: 1, kind: input, shape index: {}]
  %s2 = inlined_call_operand.vmem [shape: f32[1,256], index: 2, kind: input, shape index: {}]
  %s3 = inlined_call_operand.vmem [shape: f32[25,256], index: 3, kind: input, shape index: {}]
  %s4 = inlined_call_operand.vmem [shape: f32[1,256], index: 4, kind: input, shape index: {}]
  %s5 = inlined_call_operand.vmem [shape: f32[1,256], index: 5, kind: input, shape index: {}]
  %s6 = inlined_call_operand.vmem [shape: f32[16,256], index: 6, kind: input, shape index: {}]
  %s7 = inlined_call_operand.vmem [shape: f32[16,256], index: 7, kind: output, shape index: {}]
  %s8 = sld [smem:[#allocation0]]
  $region38: #{dis_layer_forward.1} parent=0
    _
  %s10 = ssub.s32 1, %s8
  %s11 = scalar_select 0, %s10, %s8
  // Predicated region
  $region2: #{dis_layer_forward.1} parent=0 // pred_check
    _
  $region3: #{dis_layer_forward.1} parent=0 // pred_check_branch
    %13 = sbr.rel (0) target = $region5
  $region4: #{dis_layer_forward.1} parent=0 // pred_region
    _
  $region5: #{dis_layer_forward.1} parent=0 // pred_fallthru
    _
  // Predicated region
  $region6: #{dis_layer_forward.1} parent=0 // pred_check
    _
  $region7: #{dis_layer_forward.1} parent=0 // pred_check_branch
    %15 = sbr.rel (0) target = $region9
  $region8: #{dis_layer_forward.1} parent=0 // pred_region
    _
  $region9: #{dis_layer_forward.1} parent=0 // pred_fallthru
    _
  // Predicated region
  $region10: #{dis_layer_forward.1} parent=0 // pred_check
    _
  $region11: #{dis_layer_forward.1} parent=0 // pred_check_branch
    %17 = sbr.rel (0) target = $region13
  $region12: #{dis_layer_forward.1} parent=0 // pred_region
    _
  $region13: #{dis_layer_forward.1} parent=0 // pred_fallthru
    _
  // Predicated region
  $region14: #{dis_layer_forward.1} parent=0 // pred_check
    _
  $region15: #{dis_layer_forward.1} parent=0 // pred_check_branch
    %19 = sbr.rel (0) target = $region17
  $region16: #{dis_layer_forward.1} parent=0 // pred_region
    _
  $region17: #{dis_layer_forward.1} parent=0 // pred_fallthru
    _
  // Predicated region
  $region18: #{dis_layer_forward.1} parent=0 // pred_check
    _
  $region19: #{dis_layer_forward.1} parent=0 // pred_check_branch
    %21 = sbr.rel (0) target = $region21
  $region20: #{dis_layer_forward.1} parent=0 // pred_region
    _
  $region21: #{dis_layer_forward.1} parent=0 // pred_fallthru
    _
  // Predicated region
  $region22: #{dis_layer_forward.1} parent=0 // pred_check
    _
  $region23: #{dis_layer_forward.1} parent=0 // pred_check_branch
    %23 = sbr.rel (0) target = $region25
  $region24: #{dis_layer_forward.1} parent=0 // pred_region
    _
  $region25: #{dis_layer_forward.1} parent=0 // pred_fallthru
    _
  // Predicated region
  $region26: #{dis_layer_forward.1} parent=0 // pred_check
    _
  $region27: #{dis_layer_forward.1} parent=0 // pred_check_branch
    %25 = sbr.rel (0) target = $region29
  $region28: #{dis_layer_forward.1} parent=0 // pred_region
    _
  $region29: #{dis_layer_forward.1} parent=0 // pred_fallthru
    _
  %v26 = vld [vmem:[%s0] sm:$0xff]
  %v27 = vld [vmem:[%s0 + $0x8] sm:$0xff]
  %v28 = vld [vmem:[%s0 + $0x10] sm:$0xff]
  %v29 = vld [vmem:[%s0 + $0x18] sm:$0xff]
  %v30 = vld [vmem:[%s0 + $0x20] sm:$0xf]
  %v31 = vld [vmem:[%s0 + $0x28] sm:$0xf]
  %38 = vrot.lane.b32.xlu0 %v26, 2
  %v39 = vpop.permute.xlu0 %38
  %40 = vrot.lane.b32.xlu0 %v27, 2
  %v41 = vpop.permute.xlu0 %40
  %42 = vrot.lane.b32.xlu0 %v28, 2
  %v43 = vpop.permute.xlu0 %42
  %44 = vrot.lane.b32.xlu0 %v29, 2
  %v45 = vpop.permute.xlu0 %44
  %46 = vrot.lane.b32.xlu0 %v30, 2
  %v47 = vpop.permute.xlu0 %46
  %48 = vrot.lane.b32.xlu0 %v31, 2
  %v49 = vpop.permute.xlu0 %48
  %vm50 = vcmask 15360
  %v51 = vsel %vm50, %v39, %v41
  %v52 = vsel %vm50, %v43, %v45
  %v53 = vsel %vm50, %v47, %v49
  %vm60 = vcmask 1047568
  %61 = vst.msk [vmem:[#allocation2] sm:$0xff] %vm60, %v39
  %62 = vst [vmem:[#allocation2 + $0x8] sm:$0xff] %v51
  %63 = vst.msk [vmem:[#allocation2 + $0x10] sm:$0xff] %vm60, %v43
  %64 = vst [vmem:[#allocation2 + $0x18] sm:$0xff] %v52
  %vm65 = vcmask 1043472
  %66 = vst.msk [vmem:[#allocation2 + $0x20] sm:$0xf] %vm65, %v47
  %67 = vst [vmem:[#allocation2 + $0x28] sm:$0xf] %v53
  %68 = vst.msk [vmem:[#allocation2] sm:$0xff] %vm50, 0.0
  %69 = vst.msk [vmem:[#allocation2 + $0x10] sm:$0xff] %vm50, 0.0
  %vm70 = vcmask 11264
  %71 = vst.msk [vmem:[#allocation2 + $0x20] sm:$0xf] %vm70, 0.0
  %v72 = vld [vmem:[%s0] sm:$0xff]
  %v73 = vld [vmem:[%s0 + $0x8] sm:$0xff]
  %v74 = vld [vmem:[%s0 + $0x10] sm:$0xff]
  %v75 = vld [vmem:[%s0 + $0x18] sm:$0xff]
  %v76 = vld [vmem:[%s0 + $0x20] sm:$0xf]
  %v77 = vld [vmem:[%s0 + $0x28] sm:$0xf]
  %vm84 = vcmask 1043456
  %v85 = vrot.slane %v72, 4
  %v86 = vrot.slane %v73, 4
  %v87 = vrot.slane %v74, 4
  %v88 = vsel %vm84, %v85, %v87
  %v89 = vrot.slane %v75, 4
  %v90 = vsel %vm84, %v86, %v89
  %v91 = vrot.slane %v76, 4
  %v92 = vsel %vm84, %v87, %v91
  %v93 = vrot.slane %v77, 4
  %v94 = vsel %vm84, %v89, %v93
  %95 = vrot.lane.b32.xlu0 %v85, 1
  %v96 = vpop.permute.xlu0 %95
  %97 = vrot.lane.b32.xlu0 %v86, 1
  %v98 = vpop.permute.xlu0 %97
  %99 = vrot.lane.b32.xlu0 %v88, 1
  %v100 = vpop.permute.xlu0 %99
  %101 = vrot.lane.b32.xlu0 %v90, 1
  %v102 = vpop.permute.xlu0 %101
  %103 = vrot.lane.b32.xlu0 %v92, 1
  %v104 = vpop.permute.xlu0 %103
  %105 = vrot.lane.b32.xlu0 %v94, 1
  %v106 = vpop.permute.xlu0 %105
  %vm107 = vcmask 7168
  %v108 = vsel %vm107, %v96, %v98
  %v109 = vsel %vm107, %v100, %v102
  %v110 = vsel %vm107, %v104, %v106
  %vm117 = vcmask 1047564
  %118 = vst.msk [vmem:[#allocation2 + $0x20] sm:$0xf0] %vm117, %v96
  %119 = vst [vmem:[#allocation2 + $0x28] sm:$0xf0] %v108
  %vm120 = vcmask 1047560
  %121 = vst.msk [vmem:[#allocation2 + $0x30] sm:$0xff] %vm120, %v100
  %122 = vst [vmem:[#allocation2 + $0x38] sm:$0xff] %v109
  %123 = vst.msk [vmem:[#allocation2 + $0x40] sm:$0xff] %vm120, %v104
  %124 = vst [vmem:[#allocation2 + $0x48] sm:$0xff] %v110
  %vm125 = vcmask 7172
  %126 = vst.msk [vmem:[#allocation2 + $0x20] sm:$0xf0] %vm125, 0.0
  %127 = vst.msk [vmem:[#allocation2 + $0x30] sm:$0xff] %vm107, 0.0
  %128 = vst.msk [vmem:[#allocation2 + $0x40] sm:$0xff] %vm107, 0.0
  %v129 = vld [vmem:[%s0] sm:$0xff]
  %v130 = vld [vmem:[%s0 + $0x8] sm:$0xff]
  %v131 = vld [vmem:[%s0 + $0x10] sm:$0xff]
  %v132 = vld [vmem:[%s0 + $0x18] sm:$0xff]
  %v133 = vld [vmem:[%s0 + $0x20] sm:$0xf]
  %v134 = vld [vmem:[%s0 + $0x28] sm:$0xf]
  %135 = vst [vmem:[#allocation2 + $0x50] sm:$0xff] %v129
  %136 = vst [vmem:[#allocation2 + $0x58] sm:$0xff] %v130
  %137 = vst [vmem:[#allocation2 + $0x60] sm:$0xff] %v131
  %138 = vst [vmem:[#allocation2 + $0x68] sm:$0xff] %v132
  %139 = vst [vmem:[#allocation2 + $0x70] sm:$0xf] %v133
  %140 = vst [vmem:[#allocation2 + $0x78] sm:$0xf] %v134
  %v141 = vld [vmem:[%s0] sm:$0xff]
  %v142 = vld [vmem:[%s0 + $0x8] sm:$0xff]
  %v143 = vld [vmem:[%s0 + $0x10] sm:$0xff]
  %v144 = vld [vmem:[%s0 + $0x18] sm:$0xff]
  %v145 = vld [vmem:[%s0 + $0x20] sm:$0xf]
  %v146 = vld [vmem:[%s0 + $0x28] sm:$0xf]
  %v153 = vrot.slane %v141, 4
  %v154 = vrot.slane %v142, 4
  %v155 = vrot.slane %v143, 4
  %v156 = vsel %vm84, %v153, %v155
  %v157 = vrot.slane %v144, 4
  %v158 = vsel %vm84, %v154, %v157
  %v159 = vrot.slane %v145, 4
  %v160 = vsel %vm84, %v155, %v159
  %v161 = vrot.slane %v146, 4
  %v162 = vsel %vm84, %v157, %v161
  %163 = vrot.lane.b32.xlu0 %v153, 127
  %v164 = vpop.permute.xlu0 %163
  %165 = vrot.lane.b32.xlu0 %v154, 127
  %v166 = vpop.permute.xlu0 %165
  %167 = vrot.lane.b32.xlu0 %v156, 127
  %v168 = vpop.permute.xlu0 %167
  %169 = vrot.lane.b32.xlu0 %v158, 127
  %v170 = vpop.permute.xlu0 %169
  %171 = vrot.lane.b32.xlu0 %v160, 127
  %v172 = vpop.permute.xlu0 %171
  %173 = vrot.lane.b32.xlu0 %v162, 127
  %v174 = vpop.permute.xlu0 %173
  %vm175 = vcmask 1039360
  %v176 = vsel %vm175, %v164, %v166
  %v177 = vsel %vm175, %v168, %v170
  %v178 = vsel %vm175, %v172, %v174
  %185 = vst [vmem:[#allocation2 + $0x70] sm:$0xf0] %v176
  %vm186 = vcmask 1039364
  %187 = vst.msk [vmem:[#allocation2 + $0x78] sm:$0xf0] %vm186, %v166
  %188 = vst [vmem:[#allocation2 + $0x80] sm:$0xff] %v177
  %189 = vst.msk [vmem:[#allocation2 + $0x88] sm:$0xff] %vm175, %v170
  %190 = vst [vmem:[#allocation2 + $0x90] sm:$0xff] %v178
  %191 = vst.msk [vmem:[#allocation2 + $0x98] sm:$0xff] %vm175, %v174
  %vm192 = vcmask 1048572
  %193 = vst.msk [vmem:[#allocation2 + $0x78] sm:$0xf0] %vm192, 0.0
  %vm194 = vcmask 1048568
  %195 = vst.msk [vmem:[#allocation2 + $0x88] sm:$0xff] %vm194, 0.0
  %196 = vst.msk [vmem:[#allocation2 + $0x98] sm:$0xff] %vm194, 0.0
  %v197 = vld [vmem:[%s0] sm:$0xff]
  %v198 = vld [vmem:[%s0 + $0x8] sm:$0xff]
  %v199 = vld [vmem:[%s0 + $0x10] sm:$0xff]
  %v200 = vld [vmem:[%s0 + $0x18] sm:$0xff]
  %v201 = vld [vmem:[%s0 + $0x20] sm:$0xf]
  %v202 = vld [vmem:[%s0 + $0x28] sm:$0xf]
  %209 = vrot.lane.b32.xlu0 %v197, 126
  %v210 = vpop.permute.xlu0 %209
  %211 = vrot.lane.b32.xlu0 %v198, 126
  %v212 = vpop.permute.xlu0 %211
  %213 = vrot.lane.b32.xlu0 %v199, 126
  %v214 = vpop.permute.xlu0 %213
  %215 = vrot.lane.b32.xlu0 %v200, 126
  %v216 = vpop.permute.xlu0 %215
  %217 = vrot.lane.b32.xlu0 %v201, 126
  %v218 = vpop.permute.xlu0 %217
  %219 = vrot.lane.b32.xlu0 %v202, 126
  %v220 = vpop.permute.xlu0 %219
  %vm221 = vcmask 1031168
  %v222 = vsel %vm221, %v210, %v212
  %v223 = vsel %vm221, %v214, %v216
  %v224 = vsel %vm221, %v218, %v220
  %231 = vst [vmem:[#allocation2 + $0xa0] sm:$0xff] %v222
  %232 = vst.msk [vmem:[#allocation2 + $0xa8] sm:$0xff] %vm221, %v212
  %233 = vst [vmem:[#allocation2 + $0xb0] sm:$0xff] %v223
  %234 = vst.msk [vmem:[#allocation2 + $0xb8] sm:$0xff] %vm221, %v216
  %235 = vst [vmem:[#allocation2 + $0xc0] sm:$0xf] %v224
  %vm236 = vcmask 1027072
  %237 = vst.msk [vmem:[#allocation2 + $0xc8] sm:$0xf] %vm236, %v220
  %vm238 = vcmask 1048560
  %239 = vst.msk [vmem:[#allocation2 + $0xa8] sm:$0xff] %vm238, 0.0
  %240 = vst.msk [vmem:[#allocation2 + $0xb8] sm:$0xff] %vm238, 0.0
  %vm241 = vcmask 1044464
  %242 = vst.msk [vmem:[#allocation2 + $0xc8] sm:$0xf] %vm241, 0.0
  %v243 = vld [vmem:[#allocation2] sm:$0xff]
  %v244 = vld [vmem:[#allocation2 + $0x8] sm:$0xff]
  %v245 = vld [vmem:[#allocation2 + $0x10] sm:$0xff]
  %v246 = vld [vmem:[#allocation2 + $0x18] sm:$0xff]
  %v247 = vld [vmem:[%s1] ss:$8 sm:$0x3]
  %v249 = vlaneseq
  %v250 = vshrl.u32 %v249, 7
  %v251 = vsub.s32 0, %v250
  %v252 = vrot.slane %v247, %v251
  %v253 = vlaneseq
  %v254 = vshrl.u32 %v253, 7
  %v255 = vsub.s32 1, %v254
  %v256 = vrot.slane %v247, %v255
  %v259 = vmul.f32 %v243, %v252
  %v260 = vmul.f32 %v244, %v256
  %v261 = vmul.f32 %v245, %v252
  %v262 = vmul.f32 %v246, %v256
  %v263 = vadd.f32 %v259, 0.0
  %v264 = vadd.f32 %v260, 0.0
  %v265 = vadd.f32 %v261, 0.0
  %v266 = vadd.f32 %v262, 0.0
  %v267 = vld [vmem:[#allocation2 + $0x20] sm:$0xf0]
  %v268 = vld [vmem:[#allocation2 + $0x28] sm:$0xf0]
  %v269 = vld [vmem:[#allocation2 + $0x30] sm:$0xff]
  %v270 = vld [vmem:[#allocation2 + $0x38] sm:$0xff]
  %v271 = vld [vmem:[#allocation2 + $0x40] sm:$0xf]
  %v272 = vld [vmem:[#allocation2 + $0x48] sm:$0xf]
  %s273 = scalar_lea.vmem %s1, 1
  %v274 = vld [vmem:[%s273] ss:$8 sm:$0x3]
  %v276 = vlaneseq
  %v277 = vshrl.u32 %v276, 7
  %v278 = vsub.s32 0, %v277
  %v279 = vrot.slane %v274, %v278
  %v280 = vlaneseq
  %v281 = vshrl.u32 %v280, 7
  %v282 = vsub.s32 1, %v281
  %v283 = vrot.slane %v274, %v282
  %v286 = vmul.f32 %v267, %v279
  %v287 = vmul.f32 %v268, %v283
  %v288 = vmul.f32 %v269, %v279
  %v289 = vmul.f32 %v270, %v283
  %v290 = vmul.f32 %v271, %v279
  %v291 = vmul.f32 %v272, %v283
  %v298 = vrot.slane %v286, 4
  %v299 = vrot.slane %v288, 4
  %v300 = vsel %vm84, %v298, %v299
  %v301 = vrot.slane %v287, 4
  %v302 = vrot.slane %v289, 4
  %v303 = vsel %vm84, %v301, %v302
  %v304 = vrot.slane %v290, 4
  %v305 = vsel %vm84, %v299, %v304
  %v306 = vrot.slane %v291, 4
  %v307 = vsel %vm84, %v302, %v306
  %v312 = vadd.f32 %v263, %v300
  %v313 = vadd.f32 %v264, %v303
  %v314 = vadd.f32 %v265, %v305
  %v315 = vadd.f32 %v266, %v307
  %v316 = vld [vmem:[#allocation2 + $0x50] sm:$0xff]
  %v317 = vld [vmem:[#allocation2 + $0x58] sm:$0xff]
  %v318 = vld [vmem:[#allocation2 + $0x60] sm:$0xff]
  %v319 = vld [vmem:[#allocation2 + $0x68] sm:$0xff]
  %s320 = scalar_lea.vmem %s1, 2
  %v321 = vld [vmem:[%s320] ss:$8 sm:$0x3]
  %v323 = vlaneseq
  %v324 = vshrl.u32 %v323, 7
  %v325 = vsub.s32 0, %v324
  %v326 = vrot.slane %v321, %v325
  %v327 = vlaneseq
  %v328 = vshrl.u32 %v327, 7
  %v329 = vsub.s32 1, %v328
  %v330 = vrot.slane %v321, %v329
  %v333 = vmul.f32 %v316, %v326
  %v334 = vmul.f32 %v317, %v330
  %v335 = vmul.f32 %v318, %v326
  %v336 = vmul.f32 %v319, %v330
  %v337 = vadd.f32 %v312, %v333
  %v338 = vadd.f32 %v313, %v334
  %v339 = vadd.f32 %v314, %v335
  %v340 = vadd.f32 %v315, %v336
  %v341 = vld [vmem:[#allocation2 + $0x70] sm:$0xf0]
  %v342 = vld [vmem:[#allocation2 + $0x78] sm:$0xf0]
  %v343 = vld [vmem:[#allocation2 + $0x80] sm:$0xff]
  %v344 = vld [vmem:[#allocation2 + $0x88] sm:$0xff]
  %v345 = vld [vmem:[#allocation2 + $0x90] sm:$0xf]
  %v346 = vld [vmem:[#allocation2 + $0x98] sm:$0xf]
  %s347 = scalar_lea.vmem %s1, 3
  %v348 = vld [vmem:[%s347] ss:$8 sm:$0x3]
  %v350 = vlaneseq
  %v351 = vshrl.u32 %v350, 7
  %v352 = vsub.s32 0, %v351
  %v353 = vrot.slane %v348, %v352
  %v354 = vlaneseq
  %v355 = vshrl.u32 %v354, 7
  %v356 = vsub.s32 1, %v355
  %v357 = vrot.slane %v348, %v356
  %v360 = vmul.f32 %v341, %v353
  %v361 = vmul.f32 %v342, %v357
  %v362 = vmul.f32 %v343, %v353
  %v363 = vmul.f32 %v344, %v357
  %v364 = vmul.f32 %v345, %v353
  %v365 = vmul.f32 %v346, %v357
  %v372 = vrot.slane %v360, 4
  %v373 = vrot.slane %v362, 4
  %v374 = vsel %vm84, %v372, %v373
  %v375 = vrot.slane %v361, 4
  %v376 = vrot.slane %v363, 4
  %v377 = vsel %vm84, %v375, %v376
  %v378 = vrot.slane %v364, 4
  %v379 = vsel %vm84, %v373, %v378
  %v380 = vrot.slane %v365, 4
  %v381 = vsel %vm84, %v376, %v380
  %v386 = vadd.f32 %v337, %v374
  %v387 = vadd.f32 %v338, %v377
  %v388 = vadd.f32 %v339, %v379
  %v389 = vadd.f32 %v340, %v381
  %v390 = vld [vmem:[#allocation2 + $0xa0] sm:$0xff]
  %v391 = vld [vmem:[#allocation2 + $0xa8] sm:$0xff]
  %v392 = vld [vmem:[#allocation2 + $0xb0] sm:$0xff]
  %v393 = vld [vmem:[#allocation2 + $0xb8] sm:$0xff]
  %s394 = scalar_lea.vmem %s1, 4
  %v395 = vld [vmem:[%s394] ss:$8 sm:$0x3]
  %v397 = vlaneseq
  %v398 = vshrl.u32 %v397, 7
  %v399 = vsub.s32 0, %v398
  %v400 = vrot.slane %v395, %v399
  %v401 = vlaneseq
  %v402 = vshrl.u32 %v401, 7
  %v403 = vsub.s32 1, %v402
  %v404 = vrot.slane %v395, %v403
  %v407 = vmul.f32 %v390, %v400
  %v408 = vmul.f32 %v391, %v404
  %v409 = vmul.f32 %v392, %v400
  %v410 = vmul.f32 %v393, %v404
  %v411 = vadd.f32 %v386, %v407
  %v412 = vadd.f32 %v387, %v408
  %v413 = vadd.f32 %v388, %v409
  %v414 = vadd.f32 %v389, %v410
  %v415 = vld [vmem:[#allocation2] sm:$0xfe]
  %v416 = vld [vmem:[#allocation2 + $0x8] sm:$0xfe]
  %v417 = vld [vmem:[#allocation2 + $0x20] sm:$0x1]
  %v418 = vld [vmem:[#allocation2 + $0x28] sm:$0x1]
  %s419 = scalar_lea.vmem %s1, 5
  %v420 = vld [vmem:[%s419] ss:$8 sm:$0x3]
  %v422 = vlaneseq
  %v423 = vshrl.u32 %v422, 7
  %v424 = vsub.s32 0, %v423
  %v425 = vrot.slane %v420, %v424
  %v426 = vlaneseq
  %v427 = vshrl.u32 %v426, 7
  %v428 = vsub.s32 1, %v427
  %v429 = vrot.slane %v420, %v428
  %v432 = vmul.f32 %v415, %v425
  %v433 = vmul.f32 %v416, %v429
  %v434 = vmul.f32 %v245, %v425
  %v435 = vmul.f32 %v246, %v429
  %v436 = vmul.f32 %v417, %v425
  %v437 = vmul.f32 %v418, %v429
  %vm444 = vcmask 1046528
  %v445 = vrot.slane %v432, 1
  %v446 = vrot.slane %v434, 1
  %v447 = vsel %vm444, %v445, %v446
  %v448 = vrot.slane %v433, 1
  %v449 = vrot.slane %v435, 1
  %v450 = vsel %vm444, %v448, %v449
  %v451 = vrot.slane %v436, 1
  %v452 = vsel %vm444, %v446, %v451
  %v453 = vrot.slane %v437, 1
  %v454 = vsel %vm444, %v449, %v453
  %v459 = vadd.f32 %v411, %v447
  %v460 = vadd.f32 %v412, %v450
  %v461 = vadd.f32 %v413, %v452
  %v462 = vadd.f32 %v414, %v454
  %v463 = vld [vmem:[#allocation2 + $0x20] sm:$0xe0]
  %v464 = vld [vmem:[#allocation2 + $0x28] sm:$0xe0]
  %v465 = vld [vmem:[#allocation2 + $0x40] sm:$0x1f]
  %v466 = vld [vmem:[#allocation2 + $0x48] sm:$0x1f]
  %s467 = scalar_lea.vmem %s1, 6
  %v468 = vld [vmem:[%s467] ss:$8 sm:$0x3]
  %v470 = vlaneseq
  %v471 = vshrl.u32 %v470, 7
  %v472 = vsub.s32 0, %v471
  %v473 = vrot.slane %v468, %v472
  %v474 = vlaneseq
  %v475 = vshrl.u32 %v474, 7
  %v476 = vsub.s32 1, %v475
  %v477 = vrot.slane %v468, %v476
  %v480 = vmul.f32 %v463, %v473
  %v481 = vmul.f32 %v464, %v477
  %v482 = vmul.f32 %v269, %v473
  %v483 = vmul.f32 %v270, %v477
  %v484 = vmul.f32 %v465, %v473
  %v485 = vmul.f32 %v466, %v477
  %vm492 = vcmask 1042432
  %v493 = vrot.slane %v480, 5
  %v494 = vrot.slane %v482, 5
  %v495 = vsel %vm492, %v493, %v494
  %v496 = vrot.slane %v481, 5
  %v497 = vrot.slane %v483, 5
  %v498 = vsel %vm492, %v496, %v497
  %v499 = vrot.slane %v484, 5
  %v500 = vsel %vm492, %v494, %v499
  %v501 = vrot.slane %v485, 5
  %v502 = vsel %vm492, %v497, %v501
  %v507 = vadd.f32 %v459, %v495
  %v508 = vadd.f32 %v460, %v498
  %v509 = vadd.f32 %v461, %v500
  %v510 = vadd.f32 %v462, %v502
  %v511 = vld [vmem:[#allocation2 + $0x50] sm:$0xfe]
  %v512 = vld [vmem:[#allocation2 + $0x58] sm:$0xfe]
  %v513 = vld [vmem:[#allocation2 + $0x70] sm:$0x1]
  %v514 = vld [vmem:[#allocation2 + $0x78] sm:$0x1]
  %s515 = scalar_lea.vmem %s1, 7
  %v516 = vld [vmem:[%s515] ss:$8 sm:$0x3]
  %v518 = vlaneseq
  %v519 = vshrl.u32 %v518, 7
  %v520 = vsub.s32 0, %v519
  %v521 = vrot.slane %v516, %v520
  %v522 = vlaneseq
  %v523 = vshrl.u32 %v522, 7
  %v524 = vsub.s32 1, %v523
  %v525 = vrot.slane %v516, %v524
  %v528 = vmul.f32 %v511, %v521
  %v529 = vmul.f32 %v512, %v525
  %v530 = vmul.f32 %v318, %v521
  %v531 = vmul.f32 %v319, %v525
  %v532 = vmul.f32 %v513, %v521
  %v533 = vmul.f32 %v514, %v525
  %v540 = vrot.slane %v528, 1
  %v541 = vrot.slane %v530, 1
  %v542 = vsel %vm444, %v540, %v541
  %v543 = vrot.slane %v529, 1
  %v544 = vrot.slane %v531, 1
  %v545 = vsel %vm444, %v543, %v544
  %v546 = vrot.slane %v532, 1
  %v547 = vsel %vm444, %v541, %v546
  %v548 = vrot.slane %v533, 1
  %v549 = vsel %vm444, %v544, %v548
  %v554 = vadd.f32 %v507, %v542
  %v555 = vadd.f32 %v508, %v545
  %v556 = vadd.f32 %v509, %v547
  %v557 = vadd.f32 %v510, %v549
  %v558 = vld [vmem:[#allocation2 + $0x70] sm:$0xe0]
  %v559 = vld [vmem:[#allocation2 + $0x78] sm:$0xe0]
  %v560 = vld [vmem:[#allocation2 + $0x90] sm:$0x1f]
  %v561 = vld [vmem:[#allocation2 + $0x98] sm:$0x1f]
  %s562 = scalar_lea.vmem %s1, 16
  %v563 = vld [vmem:[%s562] ss:$8 sm:$0x3]
  %v565 = vlaneseq
  %v566 = vshrl.u32 %v565, 7
  %v567 = vsub.s32 0, %v566
  %v568 = vrot.slane %v563, %v567
  %v569 = vlaneseq
  %v570 = vshrl.u32 %v569, 7
  %v571 = vsub.s32 1, %v570
  %v572 = vrot.slane %v563, %v571
  %v575 = vmul.f32 %v558, %v568
  %v576 = vmul.f32 %v559, %v572
  %v577 = vmul.f32 %v343, %v568
  %v578 = vmul.f32 %v344, %v572
  %v579 = vmul.f32 %v560, %v568
  %v580 = vmul.f32 %v561, %v572
  %v587 = vrot.slane %v575, 5
  %v588 = vrot.slane %v577, 5
  %v589 = vsel %vm492, %v587, %v588
  %v590 = vrot.slane %v576, 5
  %v591 = vrot.slane %v578, 5
  %v592 = vsel %vm492, %v590, %v591
  %v593 = vrot.slane %v579, 5
  %v594 = vsel %vm492, %v588, %v593
  %v595 = vrot.slane %v580, 5
  %v596 = vsel %vm492, %v591, %v595
  %v601 = vadd.f32 %v554, %v589
  %v602 = vadd.f32 %v555, %v592
  %v603 = vadd.f32 %v556, %v594
  %v604 = vadd.f32 %v557, %v596
  %v605 = vld [vmem:[#allocation2 + $0xa0] sm:$0xfe]
  %v606 = vld [vmem:[#allocation2 + $0xa8] sm:$0xfe]
  %v607 = vld [vmem:[#allocation2 + $0xc0] sm:$0x1]
  %v608 = vld [vmem:[#allocation2 + $0xc8] sm:$0x1]
  %s609 = scalar_lea.vmem %s1, 17
  %v610 = vld [vmem:[%s609] ss:$8 sm:$0x3]
  %v612 = vlaneseq
  %v613 = vshrl.u32 %v612, 7
  %v614 = vsub.s32 0, %v613
  %v615 = vrot.slane %v610, %v614
  %v616 = vlaneseq
  %v617 = vshrl.u32 %v616, 7
  %v618 = vsub.s32 1, %v617
  %v619 = vrot.slane %v610, %v618
  %v622 = vmul.f32 %v605, %v615
  %v623 = vmul.f32 %v606, %v619
  %v624 = vmul.f32 %v392, %v615
  %v625 = vmul.f32 %v393, %v619
  %v626 = vmul.f32 %v607, %v615
  %v627 = vmul.f32 %v608, %v619
  %v634 = vrot.slane %v622, 1
  %v635 = vrot.slane %v624, 1
  %v636 = vsel %vm444, %v634, %v635
  %v637 = vrot.slane %v623, 1
  %v638 = vrot.slane %v625, 1
  %v639 = vsel %vm444, %v637, %v638
  %v640 = vrot.slane %v626, 1
  %v641 = vsel %vm444, %v635, %v640
  %v642 = vrot.slane %v627, 1
  %v643 = vsel %vm444, %v638, %v642
  %v648 = vadd.f32 %v601, %v636
  %v649 = vadd.f32 %v602, %v639
  %v650 = vadd.f32 %v603, %v641
  %v651 = vadd.f32 %v604, %v643
  %v652 = vld [vmem:[#allocation2] sm:$0xfc]
  %v653 = vld [vmem:[#allocation2 + $0x8] sm:$0xfc]
  %v654 = vld [vmem:[#allocation2 + $0x20] sm:$0x3]
  %v655 = vld [vmem:[#allocation2 + $0x28] sm:$0x3]
  %s656 = scalar_lea.vmem %s1, 18
  %v657 = vld [vmem:[%s656] ss:$8 sm:$0x3]
  %v659 = vlaneseq
  %v660 = vshrl.u32 %v659, 7
  %v661 = vsub.s32 0, %v660
  %v662 = vrot.slane %v657, %v661
  %v663 = vlaneseq
  %v664 = vshrl.u32 %v663, 7
  %v665 = vsub.s32 1, %v664
  %v666 = vrot.slane %v657, %v665
  %v669 = vmul.f32 %v652, %v662
  %v670 = vmul.f32 %v653, %v666
  %v671 = vmul.f32 %v245, %v662
  %v672 = vmul.f32 %v246, %v666
  %v673 = vmul.f32 %v654, %v662
  %v674 = vmul.f32 %v655, %v666
  %vm681 = vcmask 1045504
  %v682 = vrot.slane %v669, 2
  %v683 = vrot.slane %v671, 2
  %v684 = vsel %vm681, %v682, %v683
  %v685 = vrot.slane %v670, 2
  %v686 = vrot.slane %v672, 2
  %v687 = vsel %vm681, %v685, %v686
  %v688 = vrot.slane %v673, 2
  %v689 = vsel %vm681, %v683, %v688
  %v690 = vrot.slane %v674, 2
  %v691 = vsel %vm681, %v686, %v690
  %v696 = vadd.f32 %v648, %v684
  %v697 = vadd.f32 %v649, %v687
  %v698 = vadd.f32 %v650, %v689
  %v699 = vadd.f32 %v651, %v691
  %v700 = vld [vmem:[#allocation2 + $0x20] sm:$0xc0]
  %v701 = vld [vmem:[#allocation2 + $0x28] sm:$0xc0]
  %v702 = vld [vmem:[#allocation2 + $0x40] sm:$0x3f]
  %v703 = vld [vmem:[#allocation2 + $0x48] sm:$0x3f]
  %s704 = scalar_lea.vmem %s1, 19
  %v705 = vld [vmem:[%s704] ss:$8 sm:$0x3]
  %v707 = vlaneseq
  %v708 = vshrl.u32 %v707, 7
  %v709 = vsub.s32 0, %v708
  %v710 = vrot.slane %v705, %v709
  %v711 = vlaneseq
  %v712 = vshrl.u32 %v711, 7
  %v713 = vsub.s32 1, %v712
  %v714 = vrot.slane %v705, %v713
  %v717 = vmul.f32 %v700, %v710
  %v718 = vmul.f32 %v701, %v714
  %v719 = vmul.f32 %v269, %v710
  %v720 = vmul.f32 %v270, %v714
  %v721 = vmul.f32 %v702, %v710
  %v722 = vmul.f32 %v703, %v714
  %vm729 = vcmask 1041408
  %v730 = vrot.slane %v717, 6
  %v731 = vrot.slane %v719, 6
  %v732 = vsel %vm729, %v730, %v731
  %v733 = vrot.slane %v718, 6
  %v734 = vrot.slane %v720, 6
  %v735 = vsel %vm729, %v733, %v734
  %v736 = vrot.slane %v721, 6
  %v737 = vsel %vm729, %v731, %v736
  %v738 = vrot.slane %v722, 6
  %v739 = vsel %vm729, %v734, %v738
  %v744 = vadd.f32 %v696, %v732
  %v745 = vadd.f32 %v697, %v735
  %v746 = vadd.f32 %v698, %v737
  %v747 = vadd.f32 %v699, %v739
  %v748 = vld [vmem:[#allocation2 + $0x50] sm:$0xfc]
  %v749 = vld [vmem:[#allocation2 + $0x58] sm:$0xfc]
  %v750 = vld [vmem:[#allocation2 + $0x70] sm:$0x3]
  %v751 = vld [vmem:[#allocation2 + $0x78] sm:$0x3]
  %s752 = scalar_lea.vmem %s1, 20
  %v753 = vld [vmem:[%s752] ss:$8 sm:$0x3]
  %v755 = vlaneseq
  %v756 = vshrl.u32 %v755, 7
  %v757 = vsub.s32 0, %v756
  %v758 = vrot.slane %v753, %v757
  %v759 = vlaneseq
  %v760 = vshrl.u32 %v759, 7
  %v761 = vsub.s32 1, %v760
  %v762 = vrot.slane %v753, %v761
  %v765 = vmul.f32 %v748, %v758
  %v766 = vmul.f32 %v749, %v762
  %v767 = vmul.f32 %v318, %v758
  %v768 = vmul.f32 %v319, %v762
  %v769 = vmul.f32 %v750, %v758
  %v770 = vmul.f32 %v751, %v762
  %v777 = vrot.slane %v765, 2
  %v778 = vrot.slane %v767, 2
  %v779 = vsel %vm681, %v777, %v778
  %v780 = vrot.slane %v766, 2
  %v781 = vrot.slane %v768, 2
  %v782 = vsel %vm681, %v780, %v781
  %v783 = vrot.slane %v769, 2
  %v784 = vsel %vm681, %v778, %v783
  %v785 = vrot.slane %v770, 2
  %v786 = vsel %vm681, %v781, %v785
  %v791 = vadd.f32 %v744, %v779
  %v792 = vadd.f32 %v745, %v782
  %v793 = vadd.f32 %v746, %v784
  %v794 = vadd.f32 %v747, %v786
  %v795 = vld [vmem:[#allocation2 + $0x70] sm:$0xc0]
  %v796 = vld [vmem:[#allocation2 + $0x78] sm:$0xc0]
  %v797 = vld [vmem:[#allocation2 + $0x90] sm:$0x3f]
  %v798 = vld [vmem:[#allocation2 + $0x98] sm:$0x3f]
  %s799 = scalar_lea.vmem %s1, 21
  %v800 = vld [vmem:[%s799] ss:$8 sm:$0x3]
  %v802 = vlaneseq
  %v803 = vshrl.u32 %v802, 7
  %v804 = vsub.s32 0, %v803
  %v805 = vrot.slane %v800, %v804
  %v806 = vlaneseq
  %v807 = vshrl.u32 %v806, 7
  %v808 = vsub.s32 1, %v807
  %v809 = vrot.slane %v800, %v808
  %v812 = vmul.f32 %v795, %v805
  %v813 = vmul.f32 %v796, %v809
  %v814 = vmul.f32 %v343, %v805
  %v815 = vmul.f32 %v344, %v809
  %v816 = vmul.f32 %v797, %v805
  %v817 = vmul.f32 %v798, %v809
  %v824 = vrot.slane %v812, 6
  %v825 = vrot.slane %v814, 6
  %v826 = vsel %vm729, %v824, %v825
  %v827 = vrot.slane %v813, 6
  %v828 = vrot.slane %v815, 6
  %v829 = vsel %vm729, %v827, %v828
  %v830 = vrot.slane %v816, 6
  %v831 = vsel %vm729, %v825, %v830
  %v832 = vrot.slane %v817, 6
  %v833 = vsel %vm729, %v828, %v832
  %v838 = vadd.f32 %v791, %v826
  %v839 = vadd.f32 %v792, %v829
  %v840 = vadd.f32 %v793, %v831
  %v841 = vadd.f32 %v794, %v833
  %v842 = vld [vmem:[#allocation2 + $0xa0] sm:$0xfc]
  %v843 = vld [vmem:[#allocation2 + $0xa8] sm:$0xfc]
  %v844 = vld [vmem:[#allocation2 + $0xc0] sm:$0x3]
  %v845 = vld [vmem:[#allocation2 + $0xc8] sm:$0x3]
  %s846 = scalar_lea.vmem %s1, 22
  %v847 = vld [vmem:[%s846] ss:$8 sm:$0x3]
  %v849 = vlaneseq
  %v850 = vshrl.u32 %v849, 7
  %v851 = vsub.s32 0, %v850
  %v852 = vrot.slane %v847, %v851
  %v853 = vlaneseq
  %v854 = vshrl.u32 %v853, 7
  %v855 = vsub.s32 1, %v854
  %v856 = vrot.slane %v847, %v855
  %v859 = vmul.f32 %v842, %v852
  %v860 = vmul.f32 %v843, %v856
  %v861 = vmul.f32 %v392, %v852
  %v862 = vmul.f32 %v393, %v856
  %v863 = vmul.f32 %v844, %v852
  %v864 = vmul.f32 %v845, %v856
  %v871 = vrot.slane %v859, 2
  %v872 = vrot.slane %v861, 2
  %v873 = vsel %vm681, %v871, %v872
  %v874 = vrot.slane %v860, 2
  %v875 = vrot.slane %v862, 2
  %v876 = vsel %vm681, %v874, %v875
  %v877 = vrot.slane %v863, 2
  %v878 = vsel %vm681, %v872, %v877
  %v879 = vrot.slane %v864, 2
  %v880 = vsel %vm681, %v875, %v879
  %v885 = vadd.f32 %v838, %v873
  %v886 = vadd.f32 %v839, %v876
  %v887 = vadd.f32 %v840, %v878
  %v888 = vadd.f32 %v841, %v880
  %v889 = vld [vmem:[#allocation2] sm:$0xf8]
  %v890 = vld [vmem:[#allocation2 + $0x8] sm:$0xf8]
  %v891 = vld [vmem:[#allocation2 + $0x20] sm:$0x7]
  %v892 = vld [vmem:[#allocation2 + $0x28] sm:$0x7]
  %s893 = scalar_lea.vmem %s1, 23
  %v894 = vld [vmem:[%s893] ss:$8 sm:$0x3]
  %v896 = vlaneseq
  %v897 = vshrl.u32 %v896, 7
  %v898 = vsub.s32 0, %v897
  %v899 = vrot.slane %v894, %v898
  %v900 = vlaneseq
  %v901 = vshrl.u32 %v900, 7
  %v902 = vsub.s32 1, %v901
  %v903 = vrot.slane %v894, %v902
  %v906 = vmul.f32 %v889, %v899
  %v907 = vmul.f32 %v890, %v903
  %v908 = vmul.f32 %v245, %v899
  %v909 = vmul.f32 %v246, %v903
  %v910 = vmul.f32 %v891, %v899
  %v911 = vmul.f32 %v892, %v903
  %vm918 = vcmask 1044480
  %v919 = vrot.slane %v906, 3
  %v920 = vrot.slane %v908, 3
  %v921 = vsel %vm918, %v919, %v920
  %v922 = vrot.slane %v907, 3
  %v923 = vrot.slane %v909, 3
  %v924 = vsel %vm918, %v922, %v923
  %v925 = vrot.slane %v910, 3
  %v926 = vsel %vm918, %v920, %v925
  %v927 = vrot.slane %v911, 3
  %v928 = vsel %vm918, %v923, %v927
  %v933 = vadd.f32 %v885, %v921
  %v934 = vadd.f32 %v886, %v924
  %v935 = vadd.f32 %v887, %v926
  %v936 = vadd.f32 %v888, %v928
  %v937 = vld [vmem:[#allocation2 + $0x20] sm:$0x80]
  %v938 = vld [vmem:[#allocation2 + $0x28] sm:$0x80]
  %v939 = vld [vmem:[#allocation2 + $0x40] sm:$0x7f]
  %v940 = vld [vmem:[#allocation2 + $0x48] sm:$0x7f]
  %s941 = scalar_lea.vmem %s1, 32
  %v942 = vld [vmem:[%s941] ss:$8 sm:$0x3]
  %v944 = vlaneseq
  %v945 = vshrl.u32 %v944, 7
  %v946 = vsub.s32 0, %v945
  %v947 = vrot.slane %v942, %v946
  %v948 = vlaneseq
  %v949 = vshrl.u32 %v948, 7
  %v950 = vsub.s32 1, %v949
  %v951 = vrot.slane %v942, %v950
  %v954 = vmul.f32 %v937, %v947
  %v955 = vmul.f32 %v938, %v951
  %v956 = vmul.f32 %v269, %v947
  %v957 = vmul.f32 %v270, %v951
  %v958 = vmul.f32 %v939, %v947
  %v959 = vmul.f32 %v940, %v951
  %vm966 = vcmask 1040384
  %v967 = vrot.slane %v954, 7
  %v968 = vrot.slane %v956, 7
  %v969 = vsel %vm966, %v967, %v968
  %v970 = vrot.slane %v955, 7
  %v971 = vrot.slane %v957, 7
  %v972 = vsel %vm966, %v970, %v971
  %v973 = vrot.slane %v958, 7
  %v974 = vsel %vm966, %v968, %v973
  %v975 = vrot.slane %v959, 7
  %v976 = vsel %vm966, %v971, %v975
  %v981 = vadd.f32 %v933, %v969
  %v982 = vadd.f32 %v934, %v972
  %v983 = vadd.f32 %v935, %v974
  %v984 = vadd.f32 %v936, %v976
  %v985 = vld [vmem:[#allocation2 + $0x50] sm:$0xf8]
  %v986 = vld [vmem:[#allocation2 + $0x58] sm:$0xf8]
  %v987 = vld [vmem:[#allocation2 + $0x70] sm:$0x7]
  %v988 = vld [vmem:[#allocation2 + $0x78] sm:$0x7]
  %s989 = scalar_lea.vmem %s1, 33
  %v990 = vld [vmem:[%s989] ss:$8 sm:$0x3]
  %v992 = vlaneseq
  %v993 = vshrl.u32 %v992, 7
  %v994 = vsub.s32 0, %v993
  %v995 = vrot.slane %v990, %v994
  %v996 = vlaneseq
  %v997 = vshrl.u32 %v996, 7
  %v998 = vsub.s32 1, %v997
  %v999 = vrot.slane %v990, %v998
  %v1002 = vmul.f32 %v985, %v995
  %v1003 = vmul.f32 %v986, %v999
  %v1004 = vmul.f32 %v318, %v995
  %v1005 = vmul.f32 %v319, %v999
  %v1006 = vmul.f32 %v987, %v995
  %v1007 = vmul.f32 %v988, %v999
  %v1014 = vrot.slane %v1002, 3
  %v1015 = vrot.slane %v1004, 3
  %v1016 = vsel %vm918, %v1014, %v1015
  %v1017 = vrot.slane %v1003, 3
  %v1018 = vrot.slane %v1005, 3
  %v1019 = vsel %vm918, %v1017, %v1018
  %v1020 = vrot.slane %v1006, 3
  %v1021 = vsel %vm918, %v1015, %v1020
  %v1022 = vrot.slane %v1007, 3
  %v1023 = vsel %vm918, %v1018, %v1022
  %v1028 = vadd.f32 %v981, %v1016
  %v1029 = vadd.f32 %v982, %v1019
  %v1030 = vadd.f32 %v983, %v1021
  %v1031 = vadd.f32 %v984, %v1023
  %v1032 = vld [vmem:[#allocation2 + $0x70] sm:$0x80]
  %v1033 = vld [vmem:[#allocation2 + $0x78] sm:$0x80]
  %v1034 = vld [vmem:[#allocation2 + $0x90] sm:$0x7f]
  %v1035 = vld [vmem:[#allocation2 + $0x98] sm:$0x7f]
  %s1036 = scalar_lea.vmem %s1, 34
  %v1037 = vld [vmem:[%s1036] ss:$8 sm:$0x3]
  %v1039 = vlaneseq
  %v1040 = vshrl.u32 %v1039, 7
  %v1041 = vsub.s32 0, %v1040
  %v1042 = vrot.slane %v1037, %v1041
  %v1043 = vlaneseq
  %v1044 = vshrl.u32 %v1043, 7
  %v1045 = vsub.s32 1, %v1044
  %v1046 = vrot.slane %v1037, %v1045
  %v1049 = vmul.f32 %v1032, %v1042
  %v1050 = vmul.f32 %v1033, %v1046
  %v1051 = vmul.f32 %v343, %v1042
  %v1052 = vmul.f32 %v344, %v1046
  %v1053 = vmul.f32 %v1034, %v1042
  %v1054 = vmul.f32 %v1035, %v1046
  %v1061 = vrot.slane %v1049, 7
  %v1062 = vrot.slane %v1051, 7
  %v1063 = vsel %vm966, %v1061, %v1062
  %v1064 = vrot.slane %v1050, 7
  %v1065 = vrot.slane %v1052, 7
  %v1066 = vsel %vm966, %v1064, %v1065
  %v1067 = vrot.slane %v1053, 7
  %v1068 = vsel %vm966, %v1062, %v1067
  %v1069 = vrot.slane %v1054, 7
  %v1070 = vsel %vm966, %v1065, %v1069
  %v1075 = vadd.f32 %v1028, %v1063
  %v1076 = vadd.f32 %v1029, %v1066
  %v1077 = vadd.f32 %v1030, %v1068
  %v1078 = vadd.f32 %v1031, %v1070
  %v1079 = vld [vmem:[#allocation2 + $0xa0] sm:$0xf8]
  %v1080 = vld [vmem:[#allocation2 + $0xa8] sm:$0xf8]
  %v1081 = vld [vmem:[#allocation2 + $0xc0] sm:$0x7]
  %v1082 = vld [vmem:[#allocation2 + $0xc8] sm:$0x7]
  %s1083 = scalar_lea.vmem %s1, 35
  %v1084 = vld [vmem:[%s1083] ss:$8 sm:$0x3]
  %v1086 = vlaneseq
  %v1087 = vshrl.u32 %v1086, 7
  %v1088 = vsub.s32 0, %v1087
  %v1089 = vrot.slane %v1084, %v1088
  %v1090 = vlaneseq
  %v1091 = vshrl.u32 %v1090, 7
  %v1092 = vsub.s32 1, %v1091
  %v1093 = vrot.slane %v1084, %v1092
  %v1096 = vmul.f32 %v1079, %v1089
  %v1097 = vmul.f32 %v1080, %v1093
  %v1098 = vmul.f32 %v392, %v1089
  %v1099 = vmul.f32 %v393, %v1093
  %v1100 = vmul.f32 %v1081, %v1089
  %v1101 = vmul.f32 %v1082, %v1093
  %v1108 = vrot.slane %v1096, 3
  %v1109 = vrot.slane %v1098, 3
  %v1110 = vsel %vm918, %v1108, %v1109
  %v1111 = vrot.slane %v1097, 3
  %v1112 = vrot.slane %v1099, 3
  %v1113 = vsel %vm918, %v1111, %v1112
  %v1114 = vrot.slane %v1100, 3
  %v1115 = vsel %vm918, %v1109, %v1114
  %v1116 = vrot.slane %v1101, 3
  %v1117 = vsel %vm918, %v1112, %v1116
  %v1122 = vadd.f32 %v1075, %v1110
  %v1123 = vadd.f32 %v1076, %v1113
  %v1124 = vadd.f32 %v1077, %v1115
  %v1125 = vadd.f32 %v1078, %v1117
  %v1126 = vld [vmem:[#allocation2] sm:$0xf0]
  %v1127 = vld [vmem:[#allocation2 + $0x8] sm:$0xf0]
  %v1128 = vld [vmem:[#allocation2 + $0x20] sm:$0xf]
  %v1129 = vld [vmem:[#allocation2 + $0x28] sm:$0xf]
  %s1130 = scalar_lea.vmem %s1, 36
  %v1131 = vld [vmem:[%s1130] ss:$8 sm:$0x3]
  %v1133 = vlaneseq
  %v1134 = vshrl.u32 %v1133, 7
  %v1135 = vsub.s32 0, %v1134
  %v1136 = vrot.slane %v1131, %v1135
  %v1137 = vlaneseq
  %v1138 = vshrl.u32 %v1137, 7
  %v1139 = vsub.s32 1, %v1138
  %v1140 = vrot.slane %v1131, %v1139
  %v1143 = vmul.f32 %v1126, %v1136
  %v1144 = vmul.f32 %v1127, %v1140
  %v1145 = vmul.f32 %v245, %v1136
  %v1146 = vmul.f32 %v246, %v1140
  %v1147 = vmul.f32 %v1128, %v1136
  %v1148 = vmul.f32 %v1129, %v1140
  %v1155 = vrot.slane %v1143, 4
  %v1156 = vrot.slane %v1145, 4
  %v1157 = vsel %vm84, %v1155, %v1156
  %v1158 = vrot.slane %v1144, 4
  %v1159 = vrot.slane %v1146, 4
  %v1160 = vsel %vm84, %v1158, %v1159
  %v1161 = vrot.slane %v1147, 4
  %v1162 = vsel %vm84, %v1156, %v1161
  %v1163 = vrot.slane %v1148, 4
  %v1164 = vsel %vm84, %v1159, %v1163
  %v1169 = vadd.f32 %v1122, %v1157
  %v1170 = vadd.f32 %v1123, %v1160
  %v1171 = vadd.f32 %v1124, %v1162
  %v1172 = vadd.f32 %v1125, %v1164
  %v1173 = vld [vmem:[#allocation2 + $0x40] sm:$0xff]
  %v1174 = vld [vmem:[#allocation2 + $0x48] sm:$0xff]
  %s1175 = scalar_lea.vmem %s1, 37
  %v1176 = vld [vmem:[%s1175] ss:$8 sm:$0x3]
  %v1178 = vlaneseq
  %v1179 = vshrl.u32 %v1178, 7
  %v1180 = vsub.s32 0, %v1179
  %v1181 = vrot.slane %v1176, %v1180
  %v1182 = vlaneseq
  %v1183 = vshrl.u32 %v1182, 7
  %v1184 = vsub.s32 1, %v1183
  %v1185 = vrot.slane %v1176, %v1184
  %v1188 = vmul.f32 %v269, %v1181
  %v1189 = vmul.f32 %v270, %v1185
  %v1190 = vmul.f32 %v1173, %v1181
  %v1191 = vmul.f32 %v1174, %v1185
  %v1192 = vadd.f32 %v1169, %v1188
  %v1193 = vadd.f32 %v1170, %v1189
  %v1194 = vadd.f32 %v1171, %v1190
  %v1195 = vadd.f32 %v1172, %v1191
  %v1196 = vld [vmem:[#allocation2 + $0x50] sm:$0xf0]
  %v1197 = vld [vmem:[#allocation2 + $0x58] sm:$0xf0]
  %v1198 = vld [vmem:[#allocation2 + $0x70] sm:$0xf]
  %v1199 = vld [vmem:[#allocation2 + $0x78] sm:$0xf]
  %s1200 = scalar_lea.vmem %s1, 38
  %v1201 = vld [vmem:[%s1200] ss:$8 sm:$0x3]
  %v1203 = vlaneseq
  %v1204 = vshrl.u32 %v1203, 7
  %v1205 = vsub.s32 0, %v1204
  %v1206 = vrot.slane %v1201, %v1205
  %v1207 = vlaneseq
  %v1208 = vshrl.u32 %v1207, 7
  %v1209 = vsub.s32 1, %v1208
  %v1210 = vrot.slane %v1201, %v1209
  %v1213 = vmul.f32 %v1196, %v1206
  %v1214 = vmul.f32 %v1197, %v1210
  %v1215 = vmul.f32 %v318, %v1206
  %v1216 = vmul.f32 %v319, %v1210
  %v1217 = vmul.f32 %v1198, %v1206
  %v1218 = vmul.f32 %v1199, %v1210
  %v1225 = vrot.slane %v1213, 4
  %v1226 = vrot.slane %v1215, 4
  %v1227 = vsel %vm84, %v1225, %v1226
  %v1228 = vrot.slane %v1214, 4
  %v1229 = vrot.slane %v1216, 4
  %v1230 = vsel %vm84, %v1228, %v1229
  %v1231 = vrot.slane %v1217, 4
  %v1232 = vsel %vm84, %v1226, %v1231
  %v1233 = vrot.slane %v1218, 4
  %v1234 = vsel %vm84, %v1229, %v1233
  %v1239 = vadd.f32 %v1192, %v1227
  %v1240 = vadd.f32 %v1193, %v1230
  %v1241 = vadd.f32 %v1194, %v1232
  %v1242 = vadd.f32 %v1195, %v1234
  %v1243 = vld [vmem:[#allocation2 + $0x90] sm:$0xff]
  %v1244 = vld [vmem:[#allocation2 + $0x98] sm:$0xff]
  %s1245 = scalar_lea.vmem %s1, 39
  %v1246 = vld [vmem:[%s1245] ss:$8 sm:$0x3]
  %v1248 = vlaneseq
  %v1249 = vshrl.u32 %v1248, 7
  %v1250 = vsub.s32 0, %v1249
  %v1251 = vrot.slane %v1246, %v1250
  %v1252 = vlaneseq
  %v1253 = vshrl.u32 %v1252, 7
  %v1254 = vsub.s32 1, %v1253
  %v1255 = vrot.slane %v1246, %v1254
  %v1258 = vmul.f32 %v343, %v1251
  %v1259 = vmul.f32 %v344, %v1255
  %v1260 = vmul.f32 %v1243, %v1251
  %v1261 = vmul.f32 %v1244, %v1255
  %v1262 = vadd.f32 %v1239, %v1258
  %v1263 = vadd.f32 %v1240, %v1259
  %v1264 = vadd.f32 %v1241, %v1260
  %v1265 = vadd.f32 %v1242, %v1261
  %v1266 = vld [vmem:[#allocation2 + $0xa0] sm:$0xf0]
  %v1267 = vld [vmem:[#allocation2 + $0xa8] sm:$0xf0]
  %v1268 = vld [vmem:[#allocation2 + $0xc0] sm:$0xf]
  %v1269 = vld [vmem:[#allocation2 + $0xc8] sm:$0xf]
  %s1270 = scalar_lea.vmem %s1, 48
  %v1271 = vld [vmem:[%s1270] ss:$8 sm:$0x3]
  %v1273 = vlaneseq
  %v1274 = vshrl.u32 %v1273, 7
  %v1275 = vsub.s32 0, %v1274
  %v1276 = vrot.slane %v1271, %v1275
  %v1277 = vlaneseq
  %v1278 = vshrl.u32 %v1277, 7
  %v1279 = vsub.s32 1, %v1278
  %v1280 = vrot.slane %v1271, %v1279
  %v1283 = vmul.f32 %v1266, %v1276
  %v1284 = vmul.f32 %v1267, %v1280
  %v1285 = vmul.f32 %v392, %v1276
  %v1286 = vmul.f32 %v393, %v1280
  %v1287 = vmul.f32 %v1268, %v1276
  %v1288 = vmul.f32 %v1269, %v1280
  %v1295 = vrot.slane %v1283, 4
  %v1296 = vrot.slane %v1285, 4
  %v1297 = vsel %vm84, %v1295, %v1296
  %v1298 = vrot.slane %v1284, 4
  %v1299 = vrot.slane %v1286, 4
  %v1300 = vsel %vm84, %v1298, %v1299
  %v1301 = vrot.slane %v1287, 4
  %v1302 = vsel %vm84, %v1296, %v1301
  %v1303 = vrot.slane %v1288, 4
  %v1304 = vsel %vm84, %v1299, %v1303
  %v1309 = vadd.f32 %v1262, %v1297
  %v1310 = vadd.f32 %v1263, %v1300
  %v1311 = vadd.f32 %v1264, %v1302
  %v1312 = vadd.f32 %v1265, %v1304
  %v1313 = vld [vmem:[%s2] sm:$0x3]
  %v1315 = vlaneseq
  %v1316 = vshrl.u32 %v1315, 7
  %v1317 = vsub.s32 0, %v1316
  %v1318 = vrot.slane %v1313, %v1317
  %v1319 = vlaneseq
  %v1320 = vshrl.u32 %v1319, 7
  %v1321 = vsub.s32 1, %v1320
  %v1322 = vrot.slane %v1313, %v1321
  %v1325 = vadd.f32 %v1309, %v1318
  %v1326 = vadd.f32 %v1310, %v1322
  %v1327 = vadd.f32 %v1311, %v1318
  %v1328 = vadd.f32 %v1312, %v1322
  %v1329 = vmax.f32 %v1325, 0.0
  %v1330 = vmax.f32 %v1326, 0.0
  %v1331 = vmax.f32 %v1327, 0.0
  %v1332 = vmax.f32 %v1328, 0.0
  %v1333 = vld [vmem:[%s5] sm:$0x3]
  %v1335 = vlaneseq
  %v1336 = vshrl.u32 %v1335, 7
  %v1337 = vsub.s32 0, %v1336
  %v1338 = vrot.slane %v1333, %v1337
  %v1339 = vlaneseq
  %v1340 = vshrl.u32 %v1339, 7
  %v1341 = vsub.s32 1, %v1340
  %v1342 = vrot.slane %v1333, %v1341
  %v1345 = vmul.f32 %v1329, %v1338
  %v1346 = vmul.f32 %v1330, %v1342
  %v1347 = vmul.f32 %v1331, %v1338
  %v1348 = vmul.f32 %v1332, %v1342
  %1349 = vst [vmem:[#allocation3] sm:$0x3] 0.0
  %1350 = vst [vmem:[#allocation3 + $0x8] sm:$0x3] 0.0
  %1351 = vst [vmem:[#allocation3 + $0x20] sm:$0xc] 0.0
  %1352 = vst [vmem:[#allocation3 + $0x28] sm:$0xc] 0.0
  %v1357 = vrot.slane %v1345, 6
  %v1358 = vrot.slane %v1346, 6
  %v1359 = vrot.slane %v1347, 6
  %v1360 = vsel %vm729, %v1357, %v1359
  %v1361 = vrot.slane %v1348, 6
  %v1362 = vsel %vm729, %v1358, %v1361
  %1369 = vst [vmem:[#allocation3] sm:$0xfc] %v1357
  %1370 = vst [vmem:[#allocation3 + $0x8] sm:$0xfc] %v1358
  %1371 = vst [vmem:[#allocation3 + $0x10] sm:$0xff] %v1360
  %1372 = vst [vmem:[#allocation3 + $0x18] sm:$0xff] %v1362
  %1373 = vst [vmem:[#allocation3 + $0x20] sm:$0x3] %v1359
  %1374 = vst [vmem:[#allocation3 + $0x28] sm:$0x3] %v1361
  %v1375 = vld [vmem:[#allocation3] sm:$0xff]
  %v1376 = vld [vmem:[#allocation3 + $0x8] sm:$0xff]
  %v1377 = vld [vmem:[#allocation3 + $0x10] sm:$0xff]
  %v1378 = vld [vmem:[#allocation3 + $0x18] sm:$0xff]
  %v1379 = vld [vmem:[#allocation3 + $0x20] sm:$0xf]
  %v1380 = vld [vmem:[#allocation3 + $0x28] sm:$0xf]
  %1387 = vrot.lane.b32.xlu0 %v1375, 2
  %v1388 = vpop.permute.xlu0 %1387
  %1389 = vrot.lane.b32.xlu0 %v1376, 2
  %v1390 = vpop.permute.xlu0 %1389
  %1391 = vrot.lane.b32.xlu0 %v1377, 2
  %v1392 = vpop.permute.xlu0 %1391
  %1393 = vrot.lane.b32.xlu0 %v1378, 2
  %v1394 = vpop.permute.xlu0 %1393
  %1395 = vrot.lane.b32.xlu0 %v1379, 2
  %v1396 = vpop.permute.xlu0 %1395
  %1397 = vrot.lane.b32.xlu0 %v1380, 2
  %v1398 = vpop.permute.xlu0 %1397
  %v1399 = vsel %vm50, %v1388, %v1390
  %v1400 = vsel %vm50, %v1392, %v1394
  %v1401 = vsel %vm50, %v1396, %v1398
  %1408 = vst.msk [vmem:[#allocation2] sm:$0xff] %vm60, %v1388
  %1409 = vst [vmem:[#allocation2 + $0x8] sm:$0xff] %v1399
  %1410 = vst.msk [vmem:[#allocation2 + $0x10] sm:$0xff] %vm60, %v1392
  %1411 = vst [vmem:[#allocation2 + $0x18] sm:$0xff] %v1400
  %1412 = vst.msk [vmem:[#allocation2 + $0x20] sm:$0xf] %vm65, %v1396
  %1413 = vst [vmem:[#allocation2 + $0x28] sm:$0xf] %v1401
  %1414 = vst.msk [vmem:[#allocation2] sm:$0xff] %vm50, 0.0
  %1415 = vst.msk [vmem:[#allocation2 + $0x10] sm:$0xff] %vm50, 0.0
  %1416 = vst.msk [vmem:[#allocation2 + $0x20] sm:$0xf] %vm70, 0.0
  %v1417 = vld [vmem:[#allocation3] sm:$0xff]
  %v1418 = vld [vmem:[#allocation3 + $0x8] sm:$0xff]
  %v1419 = vld [vmem:[#allocation3 + $0x10] sm:$0xff]
  %v1420 = vld [vmem:[#allocation3 + $0x18] sm:$0xff]
  %v1421 = vld [vmem:[#allocation3 + $0x20] sm:$0xf]
  %v1422 = vld [vmem:[#allocation3 + $0x28] sm:$0xf]
  %v1429 = vrot.slane %v1417, 4
  %v1430 = vrot.slane %v1418, 4
  %v1431 = vrot.slane %v1419, 4
  %v1432 = vsel %vm84, %v1429, %v1431
  %v1433 = vrot.slane %v1420, 4
  %v1434 = vsel %vm84, %v1430, %v1433
  %v1435 = vrot.slane %v1421, 4
  %v1436 = vsel %vm84, %v1431, %v1435
  %v1437 = vrot.slane %v1422, 4
  %v1438 = vsel %vm84, %v1433, %v1437
  %1439 = vrot.lane.b32.xlu0 %v1429, 1
  %v1440 = vpop.permute.xlu0 %1439
  %1441 = vrot.lane.b32.xlu0 %v1430, 1
  %v1442 = vpop.permute.xlu0 %1441
  %1443 = vrot.lane.b32.xlu0 %v1432, 1
  %v1444 = vpop.permute.xlu0 %1443
  %1445 = vrot.lane.b32.xlu0 %v1434, 1
  %v1446 = vpop.permute.xlu0 %1445
  %1447 = vrot.lane.b32.xlu0 %v1436, 1
  %v1448 = vpop.permute.xlu0 %1447
  %1449 = vrot.lane.b32.xlu0 %v1438, 1
  %v1450 = vpop.permute.xlu0 %1449
  %v1451 = vsel %vm107, %v1440, %v1442
  %v1452 = vsel %vm107, %v1444, %v1446
  %v1453 = vsel %vm107, %v1448, %v1450
  %1460 = vst.msk [vmem:[#allocation2 + $0x20] sm:$0xf0] %vm117, %v1440
  %1461 = vst [vmem:[#allocation2 + $0x28] sm:$0xf0] %v1451
  %1462 = vst.msk [vmem:[#allocation2 + $0x30] sm:$0xff] %vm120, %v1444
  %1463 = vst [vmem:[#allocation2 + $0x38] sm:$0xff] %v1452
  %1464 = vst.msk [vmem:[#allocation2 + $0x40] sm:$0xff] %vm120, %v1448
  %1465 = vst [vmem:[#allocation2 + $0x48] sm:$0xff] %v1453
  %1466 = vst.msk [vmem:[#allocation2 + $0x20] sm:$0xf0] %vm125, 0.0
  %1467 = vst.msk [vmem:[#allocation2 + $0x30] sm:$0xff] %vm107, 0.0
  %1468 = vst.msk [vmem:[#allocation2 + $0x40] sm:$0xff] %vm107, 0.0
  %v1469 = vld [vmem:[#allocation3] sm:$0xff]
  %v1470 = vld [vmem:[#allocation3 + $0x8] sm:$0xff]
  %v1471 = vld [vmem:[#allocation3 + $0x10] sm:$0xff]
  %v1472 = vld [vmem:[#allocation3 + $0x18] sm:$0xff]
  %v1473 = vld [vmem:[#allocation3 + $0x20] sm:$0xf]
  %v1474 = vld [vmem:[#allocation3 + $0x28] sm:$0xf]
  %1475 = vst [vmem:[#allocation2 + $0x50] sm:$0xff] %v1469
  %1476 = vst [vmem:[#allocation2 + $0x58] sm:$0xff] %v1470
  %1477 = vst [vmem:[#allocation2 + $0x60] sm:$0xff] %v1471
  %1478 = vst [vmem:[#allocation2 + $0x68] sm:$0xff] %v1472
  %1479 = vst [vmem:[#allocation2 + $0x70] sm:$0xf] %v1473
  %1480 = vst [vmem:[#allocation2 + $0x78] sm:$0xf] %v1474
  %v1481 = vld [vmem:[#allocation3] sm:$0xff]
  %v1482 = vld [vmem:[#allocation3 + $0x8] sm:$0xff]
  %v1483 = vld [vmem:[#allocation3 + $0x10] sm:$0xff]
  %v1484 = vld [vmem:[#allocation3 + $0x18] sm:$0xff]
  %v1485 = vld [vmem:[#allocation3 + $0x20] sm:$0xf]
  %v1486 = vld [vmem:[#allocation3 + $0x28] sm:$0xf]
  %v1493 = vrot.slane %v1481, 4
  %v1494 = vrot.slane %v1482, 4
  %v1495 = vrot.slane %v1483, 4
  %v1496 = vsel %vm84, %v1493, %v1495
  %v1497 = vrot.slane %v1484, 4
  %v1498 = vsel %vm84, %v1494, %v1497
  %v1499 = vrot.slane %v1485, 4
  %v1500 = vsel %vm84, %v1495, %v1499
  %v1501 = vrot.slane %v1486, 4
  %v1502 = vsel %vm84, %v1497, %v1501
  %1503 = vrot.lane.b32.xlu0 %v1493, 127
  %v1504 = vpop.permute.xlu0 %1503
  %1505 = vrot.lane.b32.xlu0 %v1494, 127
  %v1506 = vpop.permute.xlu0 %1505
  %1507 = vrot.lane.b32.xlu0 %v1496, 127
  %v1508 = vpop.permute.xlu0 %1507
  %1509 = vrot.lane.b32.xlu0 %v1498, 127
  %v1510 = vpop.permute.xlu0 %1509
  %1511 = vrot.lane.b32.xlu0 %v1500, 127
  %v1512 = vpop.permute.xlu0 %1511
  %1513 = vrot.lane.b32.xlu0 %v1502, 127
  %v1514 = vpop.permute.xlu0 %1513
  %v1515 = vsel %vm175, %v1504, %v1506
  %v1516 = vsel %vm175, %v1508, %v1510
  %v1517 = vsel %vm175, %v1512, %v1514
  %1524 = vst [vmem:[#allocation2 + $0x70] sm:$0xf0] %v1515
  %1525 = vst.msk [vmem:[#allocation2 + $0x78] sm:$0xf0] %vm186, %v1506
  %1526 = vst [vmem:[#allocation2 + $0x80] sm:$0xff] %v1516
  %1527 = vst.msk [vmem:[#allocation2 + $0x88] sm:$0xff] %vm175, %v1510
  %1528 = vst [vmem:[#allocation2 + $0x90] sm:$0xff] %v1517
  %1529 = vst.msk [vmem:[#allocation2 + $0x98] sm:$0xff] %vm175, %v1514
  %1530 = vst.msk [vmem:[#allocation2 + $0x78] sm:$0xf0] %vm192, 0.0
  %1531 = vst.msk [vmem:[#allocation2 + $0x88] sm:$0xff] %vm194, 0.0
  %1532 = vst.msk [vmem:[#allocation2 + $0x98] sm:$0xff] %vm194, 0.0
  %v1533 = vld [vmem:[#allocation3] sm:$0xff]
  %v1534 = vld [vmem:[#allocation3 + $0x8] sm:$0xff]
  %v1535 = vld [vmem:[#allocation3 + $0x10] sm:$0xff]
  %v1536 = vld [vmem:[#allocation3 + $0x18] sm:$0xff]
  %v1537 = vld [vmem:[#allocation3 + $0x20] sm:$0xf]
  %v1538 = vld [vmem:[#allocation3 + $0x28] sm:$0xf]
  %1545 = vrot.lane.b32.xlu0 %v1533, 126
  %v1546 = vpop.permute.xlu0 %1545
  %1547 = vrot.lane.b32.xlu0 %v1534, 126
  %v1548 = vpop.permute.xlu0 %1547
  %1549 = vrot.lane.b32.xlu0 %v1535, 126
  %v1550 = vpop.permute.xlu0 %1549
  %1551 = vrot.lane.b32.xlu0 %v1536, 126
  %v1552 = vpop.permute.xlu0 %1551
  %1553 = vrot.lane.b32.xlu0 %v1537, 126
  %v1554 = vpop.permute.xlu0 %1553
  %1555 = vrot.lane.b32.xlu0 %v1538, 126
  %v1556 = vpop.permute.xlu0 %1555
  %v1557 = vsel %vm221, %v1546, %v1548
  %v1558 = vsel %vm221, %v1550, %v1552
  %v1559 = vsel %vm221, %v1554, %v1556
  %1566 = vst [vmem:[#allocation2 + $0xa0] sm:$0xff] %v1557
  %1567 = vst.msk [vmem:[#allocation2 + $0xa8] sm:$0xff] %vm221, %v1548
  %1568 = vst [vmem:[#allocation2 + $0xb0] sm:$0xff] %v1558
  %1569 = vst.msk [vmem:[#allocation2 + $0xb8] sm:$0xff] %vm221, %v1552
  %1570 = vst [vmem:[#allocation2 + $0xc0] sm:$0xf] %v1559
  %1571 = vst.msk [vmem:[#allocation2 + $0xc8] sm:$0xf] %vm236, %v1556
  %1572 = vst.msk [vmem:[#allocation2 + $0xa8] sm:$0xff] %vm238, 0.0
  %1573 = vst.msk [vmem:[#allocation2 + $0xb8] sm:$0xff] %vm238, 0.0
  %1574 = vst.msk [vmem:[#allocation2 + $0xc8] sm:$0xf] %vm241, 0.0
  %v1575 = vld [vmem:[#allocation2] sm:$0xff]
  %v1576 = vld [vmem:[#allocation2 + $0x8] sm:$0xff]
  %v1577 = vld [vmem:[#allocation2 + $0x10] sm:$0xff]
  %v1578 = vld [vmem:[#allocation2 + $0x18] sm:$0xff]
  %v1579 = vld [vmem:[%s3] ss:$8 sm:$0x3]
  %v1581 = vlaneseq
  %v1582 = vshrl.u32 %v1581, 7
  %v1583 = vsub.s32 0, %v1582
  %v1584 = vrot.slane %v1579, %v1583
  %v1585 = vlaneseq
  %v1586 = vshrl.u32 %v1585, 7
  %v1587 = vsub.s32 1, %v1586
  %v1588 = vrot.slane %v1579, %v1587
  %v1591 = vmul.f32 %v1575, %v1584
  %v1592 = vmul.f32 %v1576, %v1588
  %v1593 = vmul.f32 %v1577, %v1584
  %v1594 = vmul.f32 %v1578, %v1588
  %v1595 = vadd.f32 %v1591, 0.0
  %v1596 = vadd.f32 %v1592, 0.0
  %v1597 = vadd.f32 %v1593, 0.0
  %v1598 = vadd.f32 %v1594, 0.0
  %v1599 = vld [vmem:[#allocation2 + $0x20] sm:$0xf0]
  %v1600 = vld [vmem:[#allocation2 + $0x28] sm:$0xf0]
  %v1601 = vld [vmem:[#allocation2 + $0x30] sm:$0xff]
  %v1602 = vld [vmem:[#allocation2 + $0x38] sm:$0xff]
  %v1603 = vld [vmem:[#allocation2 + $0x40] sm:$0xf]
  %v1604 = vld [vmem:[#allocation2 + $0x48] sm:$0xf]
  %s1605 = scalar_lea.vmem %s3, 1
  %v1606 = vld [vmem:[%s1605] ss:$8 sm:$0x3]
  %v1608 = vlaneseq
  %v1609 = vshrl.u32 %v1608, 7
  %v1610 = vsub.s32 0, %v1609
  %v1611 = vrot.slane %v1606, %v1610
  %v1612 = vlaneseq
  %v1613 = vshrl.u32 %v1612, 7
  %v1614 = vsub.s32 1, %v1613
  %v1615 = vrot.slane %v1606, %v1614
  %v1618 = vmul.f32 %v1599, %v1611
  %v1619 = vmul.f32 %v1600, %v1615
  %v1620 = vmul.f32 %v1601, %v1611
  %v1621 = vmul.f32 %v1602, %v1615
  %v1622 = vmul.f32 %v1603, %v1611
  %v1623 = vmul.f32 %v1604, %v1615
  %v1630 = vrot.slane %v1618, 4
  %v1631 = vrot.slane %v1620, 4
  %v1632 = vsel %vm84, %v1630, %v1631
  %v1633 = vrot.slane %v1619, 4
  %v1634 = vrot.slane %v1621, 4
  %v1635 = vsel %vm84, %v1633, %v1634
  %v1636 = vrot.slane %v1622, 4
  %v1637 = vsel %vm84, %v1631, %v1636
  %v1638 = vrot.slane %v1623, 4
  %v1639 = vsel %vm84, %v1634, %v1638
  %v1644 = vadd.f32 %v1595, %v1632
  %v1645 = vadd.f32 %v1596, %v1635
  %v1646 = vadd.f32 %v1597, %v1637
  %v1647 = vadd.f32 %v1598, %v1639
  %v1648 = vld [vmem:[#allocation2 + $0x50] sm:$0xff]
  %v1649 = vld [vmem:[#allocation2 + $0x58] sm:$0xff]
  %v1650 = vld [vmem:[#allocation2 + $0x60] sm:$0xff]
  %v1651 = vld [vmem:[#allocation2 + $0x68] sm:$0xff]
  %s1652 = scalar_lea.vmem %s3, 2
  %v1653 = vld [vmem:[%s1652] ss:$8 sm:$0x3]
  %v1655 = vlaneseq
  %v1656 = vshrl.u32 %v1655, 7
  %v1657 = vsub.s32 0, %v1656
  %v1658 = vrot.slane %v1653, %v1657
  %v1659 = vlaneseq
  %v1660 = vshrl.u32 %v1659, 7
  %v1661 = vsub.s32 1, %v1660
  %v1662 = vrot.slane %v1653, %v1661
  %v1665 = vmul.f32 %v1648, %v1658
  %v1666 = vmul.f32 %v1649, %v1662
  %v1667 = vmul.f32 %v1650, %v1658
  %v1668 = vmul.f32 %v1651, %v1662
  %v1669 = vadd.f32 %v1644, %v1665
  %v1670 = vadd.f32 %v1645, %v1666
  %v1671 = vadd.f32 %v1646, %v1667
  %v1672 = vadd.f32 %v1647, %v1668
  %v1673 = vld [vmem:[#allocation2 + $0x70] sm:$0xf0]
  %v1674 = vld [vmem:[#allocation2 + $0x78] sm:$0xf0]
  %v1675 = vld [vmem:[#allocation2 + $0x80] sm:$0xff]
  %v1676 = vld [vmem:[#allocation2 + $0x88] sm:$0xff]
  %v1677 = vld [vmem:[#allocation2 + $0x90] sm:$0xf]
  %v1678 = vld [vmem:[#allocation2 + $0x98] sm:$0xf]
  %s1679 = scalar_lea.vmem %s3, 3
  %v1680 = vld [vmem:[%s1679] ss:$8 sm:$0x3]
  %v1682 = vlaneseq
  %v1683 = vshrl.u32 %v1682, 7
  %v1684 = vsub.s32 0, %v1683
  %v1685 = vrot.slane %v1680, %v1684
  %v1686 = vlaneseq
  %v1687 = vshrl.u32 %v1686, 7
  %v1688 = vsub.s32 1, %v1687
  %v1689 = vrot.slane %v1680, %v1688
  %v1692 = vmul.f32 %v1673, %v1685
  %v1693 = vmul.f32 %v1674, %v1689
  %v1694 = vmul.f32 %v1675, %v1685
  %v1695 = vmul.f32 %v1676, %v1689
  %v1696 = vmul.f32 %v1677, %v1685
  %v1697 = vmul.f32 %v1678, %v1689
  %v1704 = vrot.slane %v1692, 4
  %v1705 = vrot.slane %v1694, 4
  %v1706 = vsel %vm84, %v1704, %v1705
  %v1707 = vrot.slane %v1693, 4
  %v1708 = vrot.slane %v1695, 4
  %v1709 = vsel %vm84, %v1707, %v1708
  %v1710 = vrot.slane %v1696, 4
  %v1711 = vsel %vm84, %v1705, %v1710
  %v1712 = vrot.slane %v1697, 4
  %v1713 = vsel %vm84, %v1708, %v1712
  %v1718 = vadd.f32 %v1669, %v1706
  %v1719 = vadd.f32 %v1670, %v1709
  %v1720 = vadd.f32 %v1671, %v1711
  %v1721 = vadd.f32 %v1672, %v1713
  %v1722 = vld [vmem:[#allocation2 + $0xa0] sm:$0xff]
  %v1723 = vld [vmem:[#allocation2 + $0xa8] sm:$0xff]
  %v1724 = vld [vmem:[#allocation2 + $0xb0] sm:$0xff]
  %v1725 = vld [vmem:[#allocation2 + $0xb8] sm:$0xff]
  %s1726 = scalar_lea.vmem %s3, 4
  %v1727 = vld [vmem:[%s1726] ss:$8 sm:$0x3]
  %v1729 = vlaneseq
  %v1730 = vshrl.u32 %v1729, 7
  %v1731 = vsub.s32 0, %v1730
  %v1732 = vrot.slane %v1727, %v1731
  %v1733 = vlaneseq
  %v1734 = vshrl.u32 %v1733, 7
  %v1735 = vsub.s32 1, %v1734
  %v1736 = vrot.slane %v1727, %v1735
  %v1739 = vmul.f32 %v1722, %v1732
  %v1740 = vmul.f32 %v1723, %v1736
  %v1741 = vmul.f32 %v1724, %v1732
  %v1742 = vmul.f32 %v1725, %v1736
  %v1743 = vadd.f32 %v1718, %v1739
  %v1744 = vadd.f32 %v1719, %v1740
  %v1745 = vadd.f32 %v1720, %v1741
  %v1746 = vadd.f32 %v1721, %v1742
  %v1747 = vld [vmem:[#allocation2] sm:$0xfe]
  %v1748 = vld [vmem:[#allocation2 + $0x8] sm:$0xfe]
  %v1749 = vld [vmem:[#allocation2 + $0x20] sm:$0x1]
  %v1750 = vld [vmem:[#allocation2 + $0x28] sm:$0x1]
  %s1751 = scalar_lea.vmem %s3, 5
  %v1752 = vld [vmem:[%s1751] ss:$8 sm:$0x3]
  %v1754 = vlaneseq
  %v1755 = vshrl.u32 %v1754, 7
  %v1756 = vsub.s32 0, %v1755
  %v1757 = vrot.slane %v1752, %v1756
  %v1758 = vlaneseq
  %v1759 = vshrl.u32 %v1758, 7
  %v1760 = vsub.s32 1, %v1759
  %v1761 = vrot.slane %v1752, %v1760
  %v1764 = vmul.f32 %v1747, %v1757
  %v1765 = vmul.f32 %v1748, %v1761
  %v1766 = vmul.f32 %v1577, %v1757
  %v1767 = vmul.f32 %v1578, %v1761
  %v1768 = vmul.f32 %v1749, %v1757
  %v1769 = vmul.f32 %v1750, %v1761
  %v1776 = vrot.slane %v1764, 1
  %v1777 = vrot.slane %v1766, 1
  %v1778 = vsel %vm444, %v1776, %v1777
  %v1779 = vrot.slane %v1765, 1
  %v1780 = vrot.slane %v1767, 1
  %v1781 = vsel %vm444, %v1779, %v1780
  %v1782 = vrot.slane %v1768, 1
  %v1783 = vsel %vm444, %v1777, %v1782
  %v1784 = vrot.slane %v1769, 1
  %v1785 = vsel %vm444, %v1780, %v1784
  %v1790 = vadd.f32 %v1743, %v1778
  %v1791 = vadd.f32 %v1744, %v1781
  %v1792 = vadd.f32 %v1745, %v1783
  %v1793 = vadd.f32 %v1746, %v1785
  %v1794 = vld [vmem:[#allocation2 + $0x20] sm:$0xe0]
  %v1795 = vld [vmem:[#allocation2 + $0x28] sm:$0xe0]
  %v1796 = vld [vmem:[#allocation2 + $0x40] sm:$0x1f]
  %v1797 = vld [vmem:[#allocation2 + $0x48] sm:$0x1f]
  %s1798 = scalar_lea.vmem %s3, 6
  %v1799 = vld [vmem:[%s1798] ss:$8 sm:$0x3]
  %v1801 = vlaneseq
  %v1802 = vshrl.u32 %v1801, 7
  %v1803 = vsub.s32 0, %v1802
  %v1804 = vrot.slane %v1799, %v1803
  %v1805 = vlaneseq
  %v1806 = vshrl.u32 %v1805, 7
  %v1807 = vsub.s32 1, %v1806
  %v1808 = vrot.slane %v1799, %v1807
  %v1811 = vmul.f32 %v1794, %v1804
  %v1812 = vmul.f32 %v1795, %v1808
  %v1813 = vmul.f32 %v1601, %v1804
  %v1814 = vmul.f32 %v1602, %v1808
  %v1815 = vmul.f32 %v1796, %v1804
  %v1816 = vmul.f32 %v1797, %v1808
  %v1823 = vrot.slane %v1811, 5
  %v1824 = vrot.slane %v1813, 5
  %v1825 = vsel %vm492, %v1823, %v1824
  %v1826 = vrot.slane %v1812, 5
  %v1827 = vrot.slane %v1814, 5
  %v1828 = vsel %vm492, %v1826, %v1827
  %v1829 = vrot.slane %v1815, 5
  %v1830 = vsel %vm492, %v1824, %v1829
  %v1831 = vrot.slane %v1816, 5
  %v1832 = vsel %vm492, %v1827, %v1831
  %v1837 = vadd.f32 %v1790, %v1825
  %v1838 = vadd.f32 %v1791, %v1828
  %v1839 = vadd.f32 %v1792, %v1830
  %v1840 = vadd.f32 %v1793, %v1832
  %v1841 = vld [vmem:[#allocation2 + $0x50] sm:$0xfe]
  %v1842 = vld [vmem:[#allocation2 + $0x58] sm:$0xfe]
  %v1843 = vld [vmem:[#allocation2 + $0x70] sm:$0x1]
  %v1844 = vld [vmem:[#allocation2 + $0x78] sm:$0x1]
  %s1845 = scalar_lea.vmem %s3, 7
  %v1846 = vld [vmem:[%s1845] ss:$8 sm:$0x3]
  %v1848 = vlaneseq
  %v1849 = vshrl.u32 %v1848, 7
  %v1850 = vsub.s32 0, %v1849
  %v1851 = vrot.slane %v1846, %v1850
  %v1852 = vlaneseq
  %v1853 = vshrl.u32 %v1852, 7
  %v1854 = vsub.s32 1, %v1853
  %v1855 = vrot.slane %v1846, %v1854
  %v1858 = vmul.f32 %v1841, %v1851
  %v1859 = vmul.f32 %v1842, %v1855
  %v1860 = vmul.f32 %v1650, %v1851
  %v1861 = vmul.f32 %v1651, %v1855
  %v1862 = vmul.f32 %v1843, %v1851
  %v1863 = vmul.f32 %v1844, %v1855
  %v1870 = vrot.slane %v1858, 1
  %v1871 = vrot.slane %v1860, 1
  %v1872 = vsel %vm444, %v1870, %v1871
  %v1873 = vrot.slane %v1859, 1
  %v1874 = vrot.slane %v1861, 1
  %v1875 = vsel %vm444, %v1873, %v1874
  %v1876 = vrot.slane %v1862, 1
  %v1877 = vsel %vm444, %v1871, %v1876
  %v1878 = vrot.slane %v1863, 1
  %v1879 = vsel %vm444, %v1874, %v1878
  %v1884 = vadd.f32 %v1837, %v1872
  %v1885 = vadd.f32 %v1838, %v1875
  %v1886 = vadd.f32 %v1839, %v1877
  %v1887 = vadd.f32 %v1840, %v1879
  %v1888 = vld [vmem:[#allocation2 + $0x70] sm:$0xe0]
  %v1889 = vld [vmem:[#allocation2 + $0x78] sm:$0xe0]
  %v1890 = vld [vmem:[#allocation2 + $0x90] sm:$0x1f]
  %v1891 = vld [vmem:[#allocation2 + $0x98] sm:$0x1f]
  %s1892 = scalar_lea.vmem %s3, 16
  %v1893 = vld [vmem:[%s1892] ss:$8 sm:$0x3]
  %v1895 = vlaneseq
  %v1896 = vshrl.u32 %v1895, 7
  %v1897 = vsub.s32 0, %v1896
  %v1898 = vrot.slane %v1893, %v1897
  %v1899 = vlaneseq
  %v1900 = vshrl.u32 %v1899, 7
  %v1901 = vsub.s32 1, %v1900
  %v1902 = vrot.slane %v1893, %v1901
  %v1905 = vmul.f32 %v1888, %v1898
  %v1906 = vmul.f32 %v1889, %v1902
  %v1907 = vmul.f32 %v1675, %v1898
  %v1908 = vmul.f32 %v1676, %v1902
  %v1909 = vmul.f32 %v1890, %v1898
  %v1910 = vmul.f32 %v1891, %v1902
  %v1917 = vrot.slane %v1905, 5
  %v1918 = vrot.slane %v1907, 5
  %v1919 = vsel %vm492, %v1917, %v1918
  %v1920 = vrot.slane %v1906, 5
  %v1921 = vrot.slane %v1908, 5
  %v1922 = vsel %vm492, %v1920, %v1921
  %v1923 = vrot.slane %v1909, 5
  %v1924 = vsel %vm492, %v1918, %v1923
  %v1925 = vrot.slane %v1910, 5
  %v1926 = vsel %vm492, %v1921, %v1925
  %v1931 = vadd.f32 %v1884, %v1919
  %v1932 = vadd.f32 %v1885, %v1922
  %v1933 = vadd.f32 %v1886, %v1924
  %v1934 = vadd.f32 %v1887, %v1926
  %v1935 = vld [vmem:[#allocation2 + $0xa0] sm:$0xfe]
  %v1936 = vld [vmem:[#allocation2 + $0xa8] sm:$0xfe]
  %v1937 = vld [vmem:[#allocation2 + $0xc0] sm:$0x1]
  %v1938 = vld [vmem:[#allocation2 + $0xc8] sm:$0x1]
  %s1939 = scalar_lea.vmem %s3, 17
  %v1940 = vld [vmem:[%s1939] ss:$8 sm:$0x3]
  %v1942 = vlaneseq
  %v1943 = vshrl.u32 %v1942, 7
  %v1944 = vsub.s32 0, %v1943
  %v1945 = vrot.slane %v1940, %v1944
  %v1946 = vlaneseq
  %v1947 = vshrl.u32 %v1946, 7
  %v1948 = vsub.s32 1, %v1947
  %v1949 = vrot.slane %v1940, %v1948
  %v1952 = vmul.f32 %v1935, %v1945
  %v1953 = vmul.f32 %v1936, %v1949
  %v1954 = vmul.f32 %v1724, %v1945
  %v1955 = vmul.f32 %v1725, %v1949
  %v1956 = vmul.f32 %v1937, %v1945
  %v1957 = vmul.f32 %v1938, %v1949
  %v1964 = vrot.slane %v1952, 1
  %v1965 = vrot.slane %v1954, 1
  %v1966 = vsel %vm444, %v1964, %v1965
  %v1967 = vrot.slane %v1953, 1
  %v1968 = vrot.slane %v1955, 1
  %v1969 = vsel %vm444, %v1967, %v1968
  %v1970 = vrot.slane %v1956, 1
  %v1971 = vsel %vm444, %v1965, %v1970
  %v1972 = vrot.slane %v1957, 1
  %v1973 = vsel %vm444, %v1968, %v1972
  %v1978 = vadd.f32 %v1931, %v1966
  %v1979 = vadd.f32 %v1932, %v1969
  %v1980 = vadd.f32 %v1933, %v1971
  %v1981 = vadd.f32 %v1934, %v1973
  %v1982 = vld [vmem:[#allocation2] sm:$0xfc]
  %v1983 = vld [vmem:[#allocation2 + $0x8] sm:$0xfc]
  %v1984 = vld [vmem:[#allocation2 + $0x20] sm:$0x3]
  %v1985 = vld [vmem:[#allocation2 + $0x28] sm:$0x3]
  %s1986 = scalar_lea.vmem %s3, 18
  %v1987 = vld [vmem:[%s1986] ss:$8 sm:$0x3]
  %v1989 = vlaneseq
  %v1990 = vshrl.u32 %v1989, 7
  %v1991 = vsub.s32 0, %v1990
  %v1992 = vrot.slane %v1987, %v1991
  %v1993 = vlaneseq
  %v1994 = vshrl.u32 %v1993, 7
  %v1995 = vsub.s32 1, %v1994
  %v1996 = vrot.slane %v1987, %v1995
  %v1999 = vmul.f32 %v1982, %v1992
  %v2000 = vmul.f32 %v1983, %v1996
  %v2001 = vmul.f32 %v1577, %v1992
  %v2002 = vmul.f32 %v1578, %v1996
  %v2003 = vmul.f32 %v1984, %v1992
  %v2004 = vmul.f32 %v1985, %v1996
  %v2011 = vrot.slane %v1999, 2
  %v2012 = vrot.slane %v2001, 2
  %v2013 = vsel %vm681, %v2011, %v2012
  %v2014 = vrot.slane %v2000, 2
  %v2015 = vrot.slane %v2002, 2
  %v2016 = vsel %vm681, %v2014, %v2015
  %v2017 = vrot.slane %v2003, 2
  %v2018 = vsel %vm681, %v2012, %v2017
  %v2019 = vrot.slane %v2004, 2
  %v2020 = vsel %vm681, %v2015, %v2019
  %v2025 = vadd.f32 %v1978, %v2013
  %v2026 = vadd.f32 %v1979, %v2016
  %v2027 = vadd.f32 %v1980, %v2018
  %v2028 = vadd.f32 %v1981, %v2020
  %v2029 = vld [vmem:[#allocation2 + $0x20] sm:$0xc0]
  %v2030 = vld [vmem:[#allocation2 + $0x28] sm:$0xc0]
  %v2031 = vld [vmem:[#allocation2 + $0x40] sm:$0x3f]
  %v2032 = vld [vmem:[#allocation2 + $0x48] sm:$0x3f]
  %s2033 = scalar_lea.vmem %s3, 19
  %v2034 = vld [vmem:[%s2033] ss:$8 sm:$0x3]
  %v2036 = vlaneseq
  %v2037 = vshrl.u32 %v2036, 7
  %v2038 = vsub.s32 0, %v2037
  %v2039 = vrot.slane %v2034, %v2038
  %v2040 = vlaneseq
  %v2041 = vshrl.u32 %v2040, 7
  %v2042 = vsub.s32 1, %v2041
  %v2043 = vrot.slane %v2034, %v2042
  %v2046 = vmul.f32 %v2029, %v2039
  %v2047 = vmul.f32 %v2030, %v2043
  %v2048 = vmul.f32 %v1601, %v2039
  %v2049 = vmul.f32 %v1602, %v2043
  %v2050 = vmul.f32 %v2031, %v2039
  %v2051 = vmul.f32 %v2032, %v2043
  %v2058 = vrot.slane %v2046, 6
  %v2059 = vrot.slane %v2048, 6
  %v2060 = vsel %vm729, %v2058, %v2059
  %v2061 = vrot.slane %v2047, 6
  %v2062 = vrot.slane %v2049, 6
  %v2063 = vsel %vm729, %v2061, %v2062
  %v2064 = vrot.slane %v2050, 6
  %v2065 = vsel %vm729, %v2059, %v2064
  %v2066 = vrot.slane %v2051, 6
  %v2067 = vsel %vm729, %v2062, %v2066
  %v2072 = vadd.f32 %v2025, %v2060
  %v2073 = vadd.f32 %v2026, %v2063
  %v2074 = vadd.f32 %v2027, %v2065
  %v2075 = vadd.f32 %v2028, %v2067
  %v2076 = vld [vmem:[#allocation2 + $0x50] sm:$0xfc]
  %v2077 = vld [vmem:[#allocation2 + $0x58] sm:$0xfc]
  %v2078 = vld [vmem:[#allocation2 + $0x70] sm:$0x3]
  %v2079 = vld [vmem:[#allocation2 + $0x78] sm:$0x3]
  %s2080 = scalar_lea.vmem %s3, 20
  %v2081 = vld [vmem:[%s2080] ss:$8 sm:$0x3]
  %v2083 = vlaneseq
  %v2084 = vshrl.u32 %v2083, 7
  %v2085 = vsub.s32 0, %v2084
  %v2086 = vrot.slane %v2081, %v2085
  %v2087 = vlaneseq
  %v2088 = vshrl.u32 %v2087, 7
  %v2089 = vsub.s32 1, %v2088
  %v2090 = vrot.slane %v2081, %v2089
  %v2093 = vmul.f32 %v2076, %v2086
  %v2094 = vmul.f32 %v2077, %v2090
  %v2095 = vmul.f32 %v1650, %v2086
  %v2096 = vmul.f32 %v1651, %v2090
  %v2097 = vmul.f32 %v2078, %v2086
  %v2098 = vmul.f32 %v2079, %v2090
  %v2105 = vrot.slane %v2093, 2
  %v2106 = vrot.slane %v2095, 2
  %v2107 = vsel %vm681, %v2105, %v2106
  %v2108 = vrot.slane %v2094, 2
  %v2109 = vrot.slane %v2096, 2
  %v2110 = vsel %vm681, %v2108, %v2109
  %v2111 = vrot.slane %v2097, 2
  %v2112 = vsel %vm681, %v2106, %v2111
  %v2113 = vrot.slane %v2098, 2
  %v2114 = vsel %vm681, %v2109, %v2113
  %v2119 = vadd.f32 %v2072, %v2107
  %v2120 = vadd.f32 %v2073, %v2110
  %v2121 = vadd.f32 %v2074, %v2112
  %v2122 = vadd.f32 %v2075, %v2114
  %v2123 = vld [vmem:[#allocation2 + $0x70] sm:$0xc0]
  %v2124 = vld [vmem:[#allocation2 + $0x78] sm:$0xc0]
  %v2125 = vld [vmem:[#allocation2 + $0x90] sm:$0x3f]
  %v2126 = vld [vmem:[#allocation2 + $0x98] sm:$0x3f]
  %s2127 = scalar_lea.vmem %s3, 21
  %v2128 = vld [vmem:[%s2127] ss:$8 sm:$0x3]
  %v2130 = vlaneseq
  %v2131 = vshrl.u32 %v2130, 7
  %v2132 = vsub.s32 0, %v2131
  %v2133 = vrot.slane %v2128, %v2132
  %v2134 = vlaneseq
  %v2135 = vshrl.u32 %v2134, 7
  %v2136 = vsub.s32 1, %v2135
  %v2137 = vrot.slane %v2128, %v2136
  %v2140 = vmul.f32 %v2123, %v2133
  %v2141 = vmul.f32 %v2124, %v2137
  %v2142 = vmul.f32 %v1675, %v2133
  %v2143 = vmul.f32 %v1676, %v2137
  %v2144 = vmul.f32 %v2125, %v2133
  %v2145 = vmul.f32 %v2126, %v2137
  %v2152 = vrot.slane %v2140, 6
  %v2153 = vrot.slane %v2142, 6
  %v2154 = vsel %vm729, %v2152, %v2153
  %v2155 = vrot.slane %v2141, 6
  %v2156 = vrot.slane %v2143, 6
  %v2157 = vsel %vm729, %v2155, %v2156
  %v2158 = vrot.slane %v2144, 6
  %v2159 = vsel %vm729, %v2153, %v2158
  %v2160 = vrot.slane %v2145, 6
  %v2161 = vsel %vm729, %v2156, %v2160
  %v2166 = vadd.f32 %v2119, %v2154
  %v2167 = vadd.f32 %v2120, %v2157
  %v2168 = vadd.f32 %v2121, %v2159
  %v2169 = vadd.f32 %v2122, %v2161
  %v2170 = vld [vmem:[#allocation2 + $0xa0] sm:$0xfc]
  %v2171 = vld [vmem:[#allocation2 + $0xa8] sm:$0xfc]
  %v2172 = vld [vmem:[#allocation2 + $0xc0] sm:$0x3]
  %v2173 = vld [vmem:[#allocation2 + $0xc8] sm:$0x3]
  %s2174 = scalar_lea.vmem %s3, 22
  %v2175 = vld [vmem:[%s2174] ss:$8 sm:$0x3]
  %v2177 = vlaneseq
  %v2178 = vshrl.u32 %v2177, 7
  %v2179 = vsub.s32 0, %v2178
  %v2180 = vrot.slane %v2175, %v2179
  %v2181 = vlaneseq
  %v2182 = vshrl.u32 %v2181, 7
  %v2183 = vsub.s32 1, %v2182
  %v2184 = vrot.slane %v2175, %v2183
  %v2187 = vmul.f32 %v2170, %v2180
  %v2188 = vmul.f32 %v2171, %v2184
  %v2189 = vmul.f32 %v1724, %v2180
  %v2190 = vmul.f32 %v1725, %v2184
  %v2191 = vmul.f32 %v2172, %v2180
  %v2192 = vmul.f32 %v2173, %v2184
  %v2199 = vrot.slane %v2187, 2
  %v2200 = vrot.slane %v2189, 2
  %v2201 = vsel %vm681, %v2199, %v2200
  %v2202 = vrot.slane %v2188, 2
  %v2203 = vrot.slane %v2190, 2
  %v2204 = vsel %vm681, %v2202, %v2203
  %v2205 = vrot.slane %v2191, 2
  %v2206 = vsel %vm681, %v2200, %v2205
  %v2207 = vrot.slane %v2192, 2
  %v2208 = vsel %vm681, %v2203, %v2207
  %v2213 = vadd.f32 %v2166, %v2201
  %v2214 = vadd.f32 %v2167, %v2204
  %v2215 = vadd.f32 %v2168, %v2206
  %v2216 = vadd.f32 %v2169, %v2208
  %v2217 = vld [vmem:[#allocation2] sm:$0xf8]
  %v2218 = vld [vmem:[#allocation2 + $0x8] sm:$0xf8]
  %v2219 = vld [vmem:[#allocation2 + $0x20] sm:$0x7]
  %v2220 = vld [vmem:[#allocation2 + $0x28] sm:$0x7]
  %s2221 = scalar_lea.vmem %s3, 23
  %v2222 = vld [vmem:[%s2221] ss:$8 sm:$0x3]
  %v2224 = vlaneseq
  %v2225 = vshrl.u32 %v2224, 7
  %v2226 = vsub.s32 0, %v2225
  %v2227 = vrot.slane %v2222, %v2226
  %v2228 = vlaneseq
  %v2229 = vshrl.u32 %v2228, 7
  %v2230 = vsub.s32 1, %v2229
  %v2231 = vrot.slane %v2222, %v2230
  %v2234 = vmul.f32 %v2217, %v2227
  %v2235 = vmul.f32 %v2218, %v2231
  %v2236 = vmul.f32 %v1577, %v2227
  %v2237 = vmul.f32 %v1578, %v2231
  %v2238 = vmul.f32 %v2219, %v2227
  %v2239 = vmul.f32 %v2220, %v2231
  %v2246 = vrot.slane %v2234, 3
  %v2247 = vrot.slane %v2236, 3
  %v2248 = vsel %vm918, %v2246, %v2247
  %v2249 = vrot.slane %v2235, 3
  %v2250 = vrot.slane %v2237, 3
  %v2251 = vsel %vm918, %v2249, %v2250
  %v2252 = vrot.slane %v2238, 3
  %v2253 = vsel %vm918, %v2247, %v2252
  %v2254 = vrot.slane %v2239, 3
  %v2255 = vsel %vm918, %v2250, %v2254
  %v2260 = vadd.f32 %v2213, %v2248
  %v2261 = vadd.f32 %v2214, %v2251
  %v2262 = vadd.f32 %v2215, %v2253
  %v2263 = vadd.f32 %v2216, %v2255
  %v2264 = vld [vmem:[#allocation2 + $0x20] sm:$0x80]
  %v2265 = vld [vmem:[#allocation2 + $0x28] sm:$0x80]
  %v2266 = vld [vmem:[#allocation2 + $0x40] sm:$0x7f]
  %v2267 = vld [vmem:[#allocation2 + $0x48] sm:$0x7f]
  %s2268 = scalar_lea.vmem %s3, 32
  %v2269 = vld [vmem:[%s2268] ss:$8 sm:$0x3]
  %v2271 = vlaneseq
  %v2272 = vshrl.u32 %v2271, 7
  %v2273 = vsub.s32 0, %v2272
  %v2274 = vrot.slane %v2269, %v2273
  %v2275 = vlaneseq
  %v2276 = vshrl.u32 %v2275, 7
  %v2277 = vsub.s32 1, %v2276
  %v2278 = vrot.slane %v2269, %v2277
  %v2281 = vmul.f32 %v2264, %v2274
  %v2282 = vmul.f32 %v2265, %v2278
  %v2283 = vmul.f32 %v1601, %v2274
  %v2284 = vmul.f32 %v1602, %v2278
  %v2285 = vmul.f32 %v2266, %v2274
  %v2286 = vmul.f32 %v2267, %v2278
  %v2293 = vrot.slane %v2281, 7
  %v2294 = vrot.slane %v2283, 7
  %v2295 = vsel %vm966, %v2293, %v2294
  %v2296 = vrot.slane %v2282, 7
  %v2297 = vrot.slane %v2284, 7
  %v2298 = vsel %vm966, %v2296, %v2297
  %v2299 = vrot.slane %v2285, 7
  %v2300 = vsel %vm966, %v2294, %v2299
  %v2301 = vrot.slane %v2286, 7
  %v2302 = vsel %vm966, %v2297, %v2301
  %v2307 = vadd.f32 %v2260, %v2295
  %v2308 = vadd.f32 %v2261, %v2298
  %v2309 = vadd.f32 %v2262, %v2300
  %v2310 = vadd.f32 %v2263, %v2302
  %v2311 = vld [vmem:[#allocation2 + $0x50] sm:$0xf8]
  %v2312 = vld [vmem:[#allocation2 + $0x58] sm:$0xf8]
  %v2313 = vld [vmem:[#allocation2 + $0x70] sm:$0x7]
  %v2314 = vld [vmem:[#allocation2 + $0x78] sm:$0x7]
  %s2315 = scalar_lea.vmem %s3, 33
  %v2316 = vld [vmem:[%s2315] ss:$8 sm:$0x3]
  %v2318 = vlaneseq
  %v2319 = vshrl.u32 %v2318, 7
  %v2320 = vsub.s32 0, %v2319
  %v2321 = vrot.slane %v2316, %v2320
  %v2322 = vlaneseq
  %v2323 = vshrl.u32 %v2322, 7
  %v2324 = vsub.s32 1, %v2323
  %v2325 = vrot.slane %v2316, %v2324
  %v2328 = vmul.f32 %v2311, %v2321
  %v2329 = vmul.f32 %v2312, %v2325
  %v2330 = vmul.f32 %v1650, %v2321
  %v2331 = vmul.f32 %v1651, %v2325
  %v2332 = vmul.f32 %v2313, %v2321
  %v2333 = vmul.f32 %v2314, %v2325
  %v2340 = vrot.slane %v2328, 3
  %v2341 = vrot.slane %v2330, 3
  %v2342 = vsel %vm918, %v2340, %v2341
  %v2343 = vrot.slane %v2329, 3
  %v2344 = vrot.slane %v2331, 3
  %v2345 = vsel %vm918, %v2343, %v2344
  %v2346 = vrot.slane %v2332, 3
  %v2347 = vsel %vm918, %v2341, %v2346
  %v2348 = vrot.slane %v2333, 3
  %v2349 = vsel %vm918, %v2344, %v2348
  %v2354 = vadd.f32 %v2307, %v2342
  %v2355 = vadd.f32 %v2308, %v2345
  %v2356 = vadd.f32 %v2309, %v2347
  %v2357 = vadd.f32 %v2310, %v2349
  %v2358 = vld [vmem:[#allocation2 + $0x70] sm:$0x80]
  %v2359 = vld [vmem:[#allocation2 + $0x78] sm:$0x80]
  %v2360 = vld [vmem:[#allocation2 + $0x90] sm:$0x7f]
  %v2361 = vld [vmem:[#allocation2 + $0x98] sm:$0x7f]
  %s2362 = scalar_lea.vmem %s3, 34
  %v2363 = vld [vmem:[%s2362] ss:$8 sm:$0x3]
  %v2365 = vlaneseq
  %v2366 = vshrl.u32 %v2365, 7
  %v2367 = vsub.s32 0, %v2366
  %v2368 = vrot.slane %v2363, %v2367
  %v2369 = vlaneseq
  %v2370 = vshrl.u32 %v2369, 7
  %v2371 = vsub.s32 1, %v2370
  %v2372 = vrot.slane %v2363, %v2371
  %v2375 = vmul.f32 %v2358, %v2368
  %v2376 = vmul.f32 %v2359, %v2372
  %v2377 = vmul.f32 %v1675, %v2368
  %v2378 = vmul.f32 %v1676, %v2372
  %v2379 = vmul.f32 %v2360, %v2368
  %v2380 = vmul.f32 %v2361, %v2372
  %v2387 = vrot.slane %v2375, 7
  %v2388 = vrot.slane %v2377, 7
  %v2389 = vsel %vm966, %v2387, %v2388
  %v2390 = vrot.slane %v2376, 7
  %v2391 = vrot.slane %v2378, 7
  %v2392 = vsel %vm966, %v2390, %v2391
  %v2393 = vrot.slane %v2379, 7
  %v2394 = vsel %vm966, %v2388, %v2393
  %v2395 = vrot.slane %v2380, 7
  %v2396 = vsel %vm966, %v2391, %v2395
  %v2401 = vadd.f32 %v2354, %v2389
  %v2402 = vadd.f32 %v2355, %v2392
  %v2403 = vadd.f32 %v2356, %v2394
  %v2404 = vadd.f32 %v2357, %v2396
  %v2405 = vld [vmem:[#allocation2 + $0xa0] sm:$0xf8]
  %v2406 = vld [vmem:[#allocation2 + $0xa8] sm:$0xf8]
  %v2407 = vld [vmem:[#allocation2 + $0xc0] sm:$0x7]
  %v2408 = vld [vmem:[#allocation2 + $0xc8] sm:$0x7]
  %s2409 = scalar_lea.vmem %s3, 35
  %v2410 = vld [vmem:[%s2409] ss:$8 sm:$0x3]
  %v2412 = vlaneseq
  %v2413 = vshrl.u32 %v2412, 7
  %v2414 = vsub.s32 0, %v2413
  %v2415 = vrot.slane %v2410, %v2414
  %v2416 = vlaneseq
  %v2417 = vshrl.u32 %v2416, 7
  %v2418 = vsub.s32 1, %v2417
  %v2419 = vrot.slane %v2410, %v2418
  %v2422 = vmul.f32 %v2405, %v2415
  %v2423 = vmul.f32 %v2406, %v2419
  %v2424 = vmul.f32 %v1724, %v2415
  %v2425 = vmul.f32 %v1725, %v2419
  %v2426 = vmul.f32 %v2407, %v2415
  %v2427 = vmul.f32 %v2408, %v2419
  %v2434 = vrot.slane %v2422, 3
  %v2435 = vrot.slane %v2424, 3
  %v2436 = vsel %vm918, %v2434, %v2435
  %v2437 = vrot.slane %v2423, 3
  %v2438 = vrot.slane %v2425, 3
  %v2439 = vsel %vm918, %v2437, %v2438
  %v2440 = vrot.slane %v2426, 3
  %v2441 = vsel %vm918, %v2435, %v2440
  %v2442 = vrot.slane %v2427, 3
  %v2443 = vsel %vm918, %v2438, %v2442
  %v2448 = vadd.f32 %v2401, %v2436
  %v2449 = vadd.f32 %v2402, %v2439
  %v2450 = vadd.f32 %v2403, %v2441
  %v2451 = vadd.f32 %v2404, %v2443
  %v2452 = vld [vmem:[#allocation2] sm:$0xf0]
  %v2453 = vld [vmem:[#allocation2 + $0x8] sm:$0xf0]
  %v2454 = vld [vmem:[#allocation2 + $0x20] sm:$0xf]
  %v2455 = vld [vmem:[#allocation2 + $0x28] sm:$0xf]
  %s2456 = scalar_lea.vmem %s3, 36
  %v2457 = vld [vmem:[%s2456] ss:$8 sm:$0x3]
  %v2459 = vlaneseq
  %v2460 = vshrl.u32 %v2459, 7
  %v2461 = vsub.s32 0, %v2460
  %v2462 = vrot.slane %v2457, %v2461
  %v2463 = vlaneseq
  %v2464 = vshrl.u32 %v2463, 7
  %v2465 = vsub.s32 1, %v2464
  %v2466 = vrot.slane %v2457, %v2465
  %v2469 = vmul.f32 %v2452, %v2462
  %v2470 = vmul.f32 %v2453, %v2466
  %v2471 = vmul.f32 %v1577, %v2462
  %v2472 = vmul.f32 %v1578, %v2466
  %v2473 = vmul.f32 %v2454, %v2462
  %v2474 = vmul.f32 %v2455, %v2466
  %v2481 = vrot.slane %v2469, 4
  %v2482 = vrot.slane %v2471, 4
  %v2483 = vsel %vm84, %v2481, %v2482
  %v2484 = vrot.slane %v2470, 4
  %v2485 = vrot.slane %v2472, 4
  %v2486 = vsel %vm84, %v2484, %v2485
  %v2487 = vrot.slane %v2473, 4
  %v2488 = vsel %vm84, %v2482, %v2487
  %v2489 = vrot.slane %v2474, 4
  %v2490 = vsel %vm84, %v2485, %v2489
  %v2495 = vadd.f32 %v2448, %v2483
  %v2496 = vadd.f32 %v2449, %v2486
  %v2497 = vadd.f32 %v2450, %v2488
  %v2498 = vadd.f32 %v2451, %v2490
  %v2499 = vld [vmem:[#allocation2 + $0x40] sm:$0xff]
  %v2500 = vld [vmem:[#allocation2 + $0x48] sm:$0xff]
  %s2501 = scalar_lea.vmem %s3, 37
  %v2502 = vld [vmem:[%s2501] ss:$8 sm:$0x3]
  %v2504 = vlaneseq
  %v2505 = vshrl.u32 %v2504, 7
  %v2506 = vsub.s32 0, %v2505
  %v2507 = vrot.slane %v2502, %v2506
  %v2508 = vlaneseq
  %v2509 = vshrl.u32 %v2508, 7
  %v2510 = vsub.s32 1, %v2509
  %v2511 = vrot.slane %v2502, %v2510
  %v2514 = vmul.f32 %v1601, %v2507
  %v2515 = vmul.f32 %v1602, %v2511
  %v2516 = vmul.f32 %v2499, %v2507
  %v2517 = vmul.f32 %v2500, %v2511
  %v2518 = vadd.f32 %v2495, %v2514
  %v2519 = vadd.f32 %v2496, %v2515
  %v2520 = vadd.f32 %v2497, %v2516
  %v2521 = vadd.f32 %v2498, %v2517
  %v2522 = vld [vmem:[#allocation2 + $0x50] sm:$0xf0]
  %v2523 = vld [vmem:[#allocation2 + $0x58] sm:$0xf0]
  %v2524 = vld [vmem:[#allocation2 + $0x70] sm:$0xf]
  %v2525 = vld [vmem:[#allocation2 + $0x78] sm:$0xf]
  %s2526 = scalar_lea.vmem %s3, 38
  %v2527 = vld [vmem:[%s2526] ss:$8 sm:$0x3]
  %v2529 = vlaneseq
  %v2530 = vshrl.u32 %v2529, 7
  %v2531 = vsub.s32 0, %v2530
  %v2532 = vrot.slane %v2527, %v2531
  %v2533 = vlaneseq
  %v2534 = vshrl.u32 %v2533, 7
  %v2535 = vsub.s32 1, %v2534
  %v2536 = vrot.slane %v2527, %v2535
  %v2539 = vmul.f32 %v2522, %v2532
  %v2540 = vmul.f32 %v2523, %v2536
  %v2541 = vmul.f32 %v1650, %v2532
  %v2542 = vmul.f32 %v1651, %v2536
  %v2543 = vmul.f32 %v2524, %v2532
  %v2544 = vmul.f32 %v2525, %v2536
  %v2551 = vrot.slane %v2539, 4
  %v2552 = vrot.slane %v2541, 4
  %v2553 = vsel %vm84, %v2551, %v2552
  %v2554 = vrot.slane %v2540, 4
  %v2555 = vrot.slane %v2542, 4
  %v2556 = vsel %vm84, %v2554, %v2555
  %v2557 = vrot.slane %v2543, 4
  %v2558 = vsel %vm84, %v2552, %v2557
  %v2559 = vrot.slane %v2544, 4
  %v2560 = vsel %vm84, %v2555, %v2559
  %v2565 = vadd.f32 %v2518, %v2553
  %v2566 = vadd.f32 %v2519, %v2556
  %v2567 = vadd.f32 %v2520, %v2558
  %v2568 = vadd.f32 %v2521, %v2560
  %v2569 = vld [vmem:[#allocation2 + $0x90] sm:$0xff]
  %v2570 = vld [vmem:[#allocation2 + $0x98] sm:$0xff]
  %s2571 = scalar_lea.vmem %s3, 39
  %v2572 = vld [vmem:[%s2571] ss:$8 sm:$0x3]
  %v2574 = vlaneseq
  %v2575 = vshrl.u32 %v2574, 7
  %v2576 = vsub.s32 0, %v2575
  %v2577 = vrot.slane %v2572, %v2576
  %v2578 = vlaneseq
  %v2579 = vshrl.u32 %v2578, 7
  %v2580 = vsub.s32 1, %v2579
  %v2581 = vrot.slane %v2572, %v2580
  %v2584 = vmul.f32 %v1675, %v2577
  %v2585 = vmul.f32 %v1676, %v2581
  %v2586 = vmul.f32 %v2569, %v2577
  %v2587 = vmul.f32 %v2570, %v2581
  %v2588 = vadd.f32 %v2565, %v2584
  %v2589 = vadd.f32 %v2566, %v2585
  %v2590 = vadd.f32 %v2567, %v2586
  %v2591 = vadd.f32 %v2568, %v2587
  %v2592 = vld [vmem:[#allocation2 + $0xa0] sm:$0xf0]
  %v2593 = vld [vmem:[#allocation2 + $0xa8] sm:$0xf0]
  %v2594 = vld [vmem:[#allocation2 + $0xc0] sm:$0xf]
  %v2595 = vld [vmem:[#allocation2 + $0xc8] sm:$0xf]
  %s2596 = scalar_lea.vmem %s3, 48
  %v2597 = vld [vmem:[%s2596] ss:$8 sm:$0x3]
  %v2599 = vlaneseq
  %v2600 = vshrl.u32 %v2599, 7
  %v2601 = vsub.s32 0, %v2600
  %v2602 = vrot.slane %v2597, %v2601
  %v2603 = vlaneseq
  %v2604 = vshrl.u32 %v2603, 7
  %v2605 = vsub.s32 1, %v2604
  %v2606 = vrot.slane %v2597, %v2605
  %v2609 = vmul.f32 %v2592, %v2602
  %v2610 = vmul.f32 %v2593, %v2606
  %v2611 = vmul.f32 %v1724, %v2602
  %v2612 = vmul.f32 %v1725, %v2606
  %v2613 = vmul.f32 %v2594, %v2602
  %v2614 = vmul.f32 %v2595, %v2606
  %v2621 = vrot.slane %v2609, 4
  %v2622 = vrot.slane %v2611, 4
  %v2623 = vsel %vm84, %v2621, %v2622
  %v2624 = vrot.slane %v2610, 4
  %v2625 = vrot.slane %v2612, 4
  %v2626 = vsel %vm84, %v2624, %v2625
  %v2627 = vrot.slane %v2613, 4
  %v2628 = vsel %vm84, %v2622, %v2627
  %v2629 = vrot.slane %v2614, 4
  %v2630 = vsel %vm84, %v2625, %v2629
  %v2635 = vadd.f32 %v2588, %v2623
  %v2636 = vadd.f32 %v2589, %v2626
  %v2637 = vadd.f32 %v2590, %v2628
  %v2638 = vadd.f32 %v2591, %v2630
  %v2639 = vld [vmem:[%s4] sm:$0x3]
  %v2641 = vlaneseq
  %v2642 = vshrl.u32 %v2641, 7
  %v2643 = vsub.s32 0, %v2642
  %v2644 = vrot.slane %v2639, %v2643
  %v2645 = vlaneseq
  %v2646 = vshrl.u32 %v2645, 7
  %v2647 = vsub.s32 1, %v2646
  %v2648 = vrot.slane %v2639, %v2647
  %v2651 = vadd.f32 %v2635, %v2644
  %v2652 = vadd.f32 %v2636, %v2648
  %v2653 = vadd.f32 %v2637, %v2644
  %v2654 = vadd.f32 %v2638, %v2648
  %v2655 = vld [vmem:[%s0] sm:$0xfc]
  %v2656 = vld [vmem:[%s0 + $0x8] sm:$0xfc]
  %v2657 = vld [vmem:[%s0 + $0x10] sm:$0xff]
  %v2658 = vld [vmem:[%s0 + $0x18] sm:$0xff]
  %v2659 = vld [vmem:[%s0 + $0x20] sm:$0x3]
  %v2660 = vld [vmem:[%s0 + $0x28] sm:$0x3]
  %v2661 = vld [vmem:[%s6] sm:$0xff]
  %v2662 = vld [vmem:[%s6 + $0x8] sm:$0xff]
  %v2663 = vld [vmem:[%s6 + $0x10] sm:$0xff]
  %v2664 = vld [vmem:[%s6 + $0x18] sm:$0xff]
  %v2665 = vmul.f32 %v2651, %v2661
  %v2666 = vmul.f32 %v2652, %v2662
  %v2667 = vmul.f32 %v2653, %v2663
  %v2668 = vmul.f32 %v2654, %v2664
  %v2673 = vrot.slane %v2665, 6
  %v2674 = vrot.slane %v2666, 6
  %v2675 = vrot.slane %v2667, 6
  %v2676 = vsel %vm729, %v2673, %v2675
  %v2677 = vrot.slane %v2668, 6
  %v2678 = vsel %vm729, %v2674, %v2677
  %v2685 = vadd.f32 %v2655, %v2673
  %v2686 = vadd.f32 %v2656, %v2674
  %v2687 = vadd.f32 %v2657, %v2676
  %v2688 = vadd.f32 %v2658, %v2678
  %v2689 = vadd.f32 %v2659, %v2675
  %v2690 = vadd.f32 %v2660, %v2677
  %v2697 = vrot.slane %v2685, 2
  %v2698 = vrot.slane %v2687, 2
  %v2699 = vsel %vm681, %v2697, %v2698
  %v2700 = vrot.slane %v2686, 2
  %v2701 = vrot.slane %v2688, 2
  %v2702 = vsel %vm681, %v2700, %v2701
  %v2703 = vrot.slane %v2689, 2
  %v2704 = vsel %vm681, %v2698, %v2703
  %v2705 = vrot.slane %v2690, 2
  %v2706 = vsel %vm681, %v2701, %v2705
  %2711 = vst [vmem:[%s7] sm:$0xff] %v2699
  %2712 = vst [vmem:[%s7 + $0x8] sm:$0xff] %v2702
  %2713 = vst [vmem:[%s7 + $0x10] sm:$0xff] %v2704
  %2714 = vst [vmem:[%s7 + $0x18] sm:$0xff] %v2706
  // Predicated region
  $region30: #{dis_layer_forward.1} parent=0 // pred_check
    _
  $region31: #{dis_layer_forward.1} parent=0 // pred_check_branch
    %2716 = sbr.rel (0) target = $region33
  $region32: #{dis_layer_forward.1} parent=0 // pred_region
    _
  $region33: #{dis_layer_forward.1} parent=0 // pred_fallthru
    _
  // Predicated region
  $region34: #{dis_layer_forward.1} parent=0 // pred_check
    _
  $region35: #{dis_layer_forward.1} parent=0 // pred_check_branch
    %2718 = sbr.rel (0) target = $region37
  $region36: #{dis_layer_forward.1} parent=0 // pred_region
    _
  $region37: #{dis_layer_forward.1} parent=0 // pred_fallthru
    _

</llo_original>
